<compile_context>
chip_gen: v6e
topology: v6e:2x2x1
jax: 0.10.0
libtpu: 0.0.40
codegen_flags: <defaults>
</compile_context>

<pallas_src>
import functools

import jax
import jax.numpy as jnp
from jax.experimental import pallas as pl
from jax.experimental.pallas import tpu as pltpu


def _cdiv(a, b):
    return (a + b - 1) // b


def _round_up(a, b):
    return _cdiv(a, b) * b


def _vmem_limit_bytes():
    """Scoped-VMEM limit from physical VMEM (128 MiB v5e/v6e, 64 MiB/TC v7x)."""
    phys = 128 * 1024 * 1024
    try:
        info = pltpu.get_tpu_info()
        phys = int(getattr(info, "vmem_capacity_bytes", phys))
    except Exception:
        pass
    if phys >= 100 * 1024 * 1024:
        return 64 * 1024 * 1024          # v5e / v6e: plenty of headroom
    return 28 * 1024 * 1024              # v7x: 64 MiB physical per TensorCore


def _default_num_splits():
    """2 parallel splits only where there are 2 TensorCores per chip (v7x)."""
    try:
        kind = jax.devices()[0].device_kind.lower()
    except Exception:
        return 1
    return 2 if ("v7" in kind or "7x" in kind) else 1


# --------------------------------------------------------------------------
# Kernels
# --------------------------------------------------------------------------
def _ece_lane_kernel(logits_ref, labels_ref, stats_ref,
                     cnt_acc, conf_acc, acc_acc, *,
                     n_classes, n_total, n_bins, block_rows, steps_per_split):
    """Small-C path.  logits block is the native (block_rows, 128) row-major
    window (lanes >= n_classes are never DMA'd); it is transposed in-kernel so
    samples sit on the 128-wide lane axis and per-sample values are lane-dense.
    """
    s = pl.program_id(0)              # split (parallel; one per TC on v7x)
    j = pl.program_id(1)              # step within split (reduction axis)

    @pl.when(j == 0)
    def _init():
        cnt_acc[...] = jnp.zeros_like(cnt_acc)
        conf_acc[...] = jnp.zeros_like(conf_acc)
        acc_acc[...] = jnp.zeros_like(acc_acc)

    start = (s * steps_per_split + j) * block_rows

    @pl.when(start < n_total)         # skip duplicated / clamped tail steps
    def _compute():
        x = logits_ref[...].astype(jnp.float32)                # (br, 128)
        xt = x.T[:n_classes, :]                                # (C, br), aligned transpose
        m = jnp.max(xt, axis=0, keepdims=True)                 # (1, br)
        denom = jnp.sum(jnp.exp(xt - m), axis=0, keepdims=True)
        conf = pl.reciprocal(denom, approx=False)              # max softmax prob

        # first index achieving the max (matches torch.max tie-breaking);
        # narrow (C,1) iota broadcasts against (C, br).
        cls = jax.lax.broadcasted_iota(
            jnp.int32, (n_classes, 1), 0).astype(jnp.float32)
        pred = jnp.min(jnp.where(xt == m, cls, jnp.float32(n_classes)),
                       axis=0, keepdims=True)                  # (1, br)
        acc = (pred == labels_ref[...].astype(jnp.float32)).astype(jnp.float32)

        # mask samples past N (ragged last block)
        lane = jax.lax.broadcasted_iota(jnp.int32, (1, block_rows), 1)
        conf = jnp.where(start + lane < n_total, conf, 0.0)

        # bin membership against narrow (n_bins, 1) boundary constants;
        # bin k is (k/n_bins, (k+1)/n_bins] as in the reference.
        k = jax.lax.broadcasted_iota(
            jnp.int32, (n_bins, 1), 0).astype(jnp.float32)
        lowers = k * (1.0 / n_bins)
        uppers = (k + 1.0) * (1.0 / n_bins)
        in_bin = jnp.logical_and(conf > lowers, conf <= uppers).astype(jnp.float32)

        cnt_acc[...] += jnp.sum(in_bin, axis=1, keepdims=True)           # (n_bins,1)
        conf_acc[...] += jnp.sum(in_bin * conf, axis=1, keepdims=True)
        acc_acc[...] += jnp.sum(in_bin * acc, axis=1, keepdims=True)

    @pl.when(j == steps_per_split - 1)
    def _fini():
        stats_ref[0, :, :] = jnp.concatenate(
            [cnt_acc[...], conf_acc[...], acc_acc[...]], axis=1)         # (n_bins,3)


def _ece_row_kernel(logits_ref, labels_ref, stats_ref,
                    cnt_acc, conf_acc, acc_acc, *,
                    n_total, n_bins, block_rows, steps_per_split):
    """Large-C path: the class axis is already lane-dense in the native layout."""
    s = pl.program_id(0)
    j = pl.program_id(1)

    @pl.when(j == 0)
    def _init():
        cnt_acc[...] = jnp.zeros_like(cnt_acc)
        conf_acc[...] = jnp.zeros_like(conf_acc)
        acc_acc[...] = jnp.zeros_like(acc_acc)

    start = (s * steps_per_split + j) * block_rows

    @pl.when(start < n_total)
    def _compute():
        x = logits_ref[...].astype(jnp.float32)                # (br, C)
        c = x.shape[-1]
        m = jnp.max(x, axis=-1, keepdims=True)                 # (br, 1)
        denom = jnp.sum(jnp.exp(x - m), axis=-1, keepdims=True)
        conf = pl.reciprocal(denom, approx=False)              # (br, 1)

        col = jax.lax.broadcasted_iota(jnp.int32, (1, c), 1)   # narrow, broadcasts
        pred = jnp.min(jnp.where(x == m, col, c), axis=-1, keepdims=True)
        acc = (pred == labels_ref[...]).astype(jnp.float32)    # (br, 1)

        row = jax.lax.broadcasted_iota(jnp.int32, (block_rows, 1), 0)
        conf = jnp.where(start + row < n_total, conf, 0.0)

        k = jax.lax.broadcasted_iota(
            jnp.int32, (1, n_bins), 1).astype(jnp.float32)
        lowers = k * (1.0 / n_bins)
        uppers = (k + 1.0) * (1.0 / n_bins)
        in_bin = jnp.logical_and(conf > lowers, conf <= uppers).astype(jnp.float32)

        cnt_acc[...] += jnp.sum(in_bin, axis=0, keepdims=True)           # (1,n_bins)
        conf_acc[...] += jnp.sum(in_bin * conf, axis=0, keepdims=True)
        acc_acc[...] += jnp.sum(in_bin * acc, axis=0, keepdims=True)

    @pl.when(j == steps_per_split - 1)
    def _fini():
        stats_ref[0, :, :] = jnp.concatenate(
            [cnt_acc[...], conf_acc[...], acc_acc[...]], axis=0)         # (3,n_bins)


# --------------------------------------------------------------------------
# Wrappers
# --------------------------------------------------------------------------
def _grid_params(n, block, num_splits):
    nblocks = _cdiv(n, block)
    if num_splits is None:
        num_splits = _default_num_splits()
    num_splits = max(1, min(num_splits, nblocks))
    spp = _cdiv(nblocks, num_splits)                 # steps per split
    return nblocks, num_splits, spp


def _stats_small_c(logits, labels, n_bins, block, num_splits):
    """C < 128: one HBM pass over the native (N, C) layout; samples become
    lane-dense via an in-kernel aligned transpose of each (block, 128) tile."""
    n, c = logits.shape
    itemsize = jnp.dtype(logits.dtype).itemsize
    vmem_limit = _vmem_limit_bytes()

    if block is None:
        per_row = 128 * itemsize + 4                 # VMEM-padded logits row + label
        cand = (vmem_limit // 3) // (2 * per_row)    # 2 = double buffering
        block = min(max((cand // 128) * 128, 128), 16384)
    else:
        block = _round_up(block, 128)
    if n >= 128:
        block = min(block, (n // 128) * 128)         # keep block <= N, 128-aligned
    nblocks, num_splits, spp = _grid_params(n, block, num_splits)

    labels2d = labels.astype(jnp.int32).reshape(1, n)
    kernel = functools.partial(
        _ece_lane_kernel, n_classes=c, n_total=n, n_bins=n_bins,
        block_rows=block, steps_per_split=spp)

    def blk(s, j):
        return jnp.minimum(s * spp + j, nblocks - 1)

    stats = pl.pallas_call(
        kernel,
        out_shape=jax.ShapeDtypeStruct((num_splits, n_bins, 3), jnp.float32),
        grid_spec=pltpu.PrefetchScalarGridSpec(
            num_scalar_prefetch=0,
            grid=(num_splits, spp),
            in_specs=[
                # 128-wide class window (>= C): identical DMA/VMEM footprint to
                # a C-wide block, but keeps the in-kernel transpose tile-aligned.
                pl.BlockSpec((block, 128), lambda s, j: (blk(s, j), 0)),
                pl.BlockSpec((1, block), lambda s, j: (0, blk(s, j))),
            ],
            out_specs=pl.BlockSpec((1, n_bins, 3), lambda s, j: (s, 0, 0)),
            scratch_shapes=[pltpu.VMEM((n_bins, 1), jnp.float32)] * 3,
        ),
        compiler_params=pltpu.CompilerParams(
            dimension_semantics=("parallel", "arbitrary"),
            vmem_limit_bytes=vmem_limit),
    )(logits, labels2d)

    totals = jnp.sum(stats, axis=0)                  # (n_bins, 3)
    return totals[:, 0], totals[:, 1], totals[:, 2]


def _stats_row_major(logits, labels, n_bins, block, num_splits):
    n, c = logits.shape
    itemsize = jnp.dtype(logits.dtype).itemsize
    vmem_limit = _vmem_limit_bytes()

    if block is None:
        c_pad = _round_up(c, 128)
        per_row = c_pad * itemsize + 128 * 4         # logits row + padded label row
        cand = (vmem_limit // 3) // (2 * per_row)
        if cand >= n:
            block = n
        else:
            block = min(max((cand // 64) * 64, 64), 8192)
    nblocks, num_splits, spp = _grid_params(n, block, num_splits)

    labels2d = labels.astype(jnp.int32).reshape(n, 1)
    kernel = functools.partial(
        _ece_row_kernel, n_total=n, n_bins=n_bins,
        block_rows=block, steps_per_split=spp)

    def blk(s, j):
        return jnp.minimum(s * spp + j, nblocks - 1)

    stats = pl.pallas_call(
        kernel,
        out_shape=jax.ShapeDtypeStruct((num_splits, 3, n_bins), jnp.float32),
        grid_spec=pltpu.PrefetchScalarGridSpec(
            num_scalar_prefetch=0,
            grid=(num_splits, spp),
            in_specs=[
                pl.BlockSpec((block, c), lambda s, j: (blk(s, j), 0)),
                pl.BlockSpec((block, 1), lambda s, j: (blk(s, j), 0)),
            ],
            out_specs=pl.BlockSpec((1, 3, n_bins), lambda s, j: (s, 0, 0)),
            scratch_shapes=[pltpu.VMEM((1, n_bins), jnp.float32)] * 3,
        ),
        compiler_params=pltpu.CompilerParams(
            dimension_semantics=("parallel", "arbitrary"),
            vmem_limit_bytes=vmem_limit),
    )(logits, labels2d)

    totals = jnp.sum(stats, axis=0)                  # (3, n_bins)
    return totals[0], totals[1], totals[2]


def _finalize(counts, conf_sums, acc_sums, n):
    prop_in_bin = counts / jnp.float32(n)
    safe = jnp.maximum(counts, 1.0)
    gap = jnp.abs(conf_sums / safe - acc_sums / safe)
    ece = jnp.sum(jnp.where(counts > 0.0, gap * prop_in_bin, 0.0))
    return ece.reshape(1)             # matches torch.zeros(1)-shaped output


def ece_loss(logits, labels, n_bins: int = 15, *, block=None, num_splits=None):
    """Expected Calibration Error.  logits: (N, C) float, labels: (N,) int."""
    n, c = logits.shape
    if c < 128:
        try:
            counts, conf_sums, acc_sums = _stats_small_c(
                logits, labels, n_bins, block, num_splits)
        except Exception:
            # Safety net: the row-major kernel is correct for any C; used only
            # if the lane-dense (transposed) lowering is unavailable.
            counts, conf_sums, acc_sums = _stats_row_major(
                logits, labels, n_bins, block, num_splits)
    else:
        counts, conf_sums, acc_sums = _stats_row_major(
            logits, labels, n_bins, block, num_splits)
    return _finalize(counts, conf_sums, acc_sums, n)


# --------------------------------------------------------------------------
# Pure-JAX reference (mirrors the PyTorch module)
# --------------------------------------------------------------------------
def _ece_reference(logits, labels, n_bins: int = 15):
    softmaxes = jax.nn.softmax(logits.astype(jnp.float32), axis=1)
    confidences = jnp.max(softmaxes, axis=1)
    predictions = jnp.argmax(softmaxes, axis=1)
    accuracies = (predictions == labels).astype(jnp.float32)
    boundaries = jnp.linspace(0.0, 1.0, n_bins + 1, dtype=jnp.float32)
    n = logits.shape[0]
    ece = jnp.zeros((1,), jnp.float32)
    for b in range(n_bins):
        in_bin = (confidences > boundaries[b]) & (confidences <= boundaries[b + 1])
        cnt = jnp.sum(in_bin.astype(jnp.float32))
        prop = cnt / n
        safe = jnp.maximum(cnt, 1.0)
        avg_conf = jnp.sum(jnp.where(in_bin, confidences, 0.0)) / safe
        acc_in_bin = jnp.sum(jnp.where(in_bin, accuracies, 0.0)) / safe
        ece = ece + jnp.where(cnt > 0, jnp.abs(avg_conf - acc_in_bin) * prop, 0.0)
    return ece


if __name__ == "__main__":
    key = jax.random.PRNGKey(0)
    k1, k2, k3, k4 = jax.random.split(key, 4)

    # Small-C problem (lane-dense path).  N is deliberately NOT a multiple of
    # the tile so tail masking + the parallel split + step skipping are hit.
    N1, C1 = 400, 10
    logits1 = jax.random.normal(k1, (N1, C1), dtype=jnp.float32) * 2.0
    labels1 = jax.random.randint(k2, (N1,), 0, C1, dtype=jnp.int32)
    ece1 = ece_loss(logits1, labels1, n_bins=15, block=128, num_splits=2)
    ece1_default = ece_loss(logits1, labels1, n_bins=15)
    ref1 = _ece_reference(logits1, labels1, n_bins=15)

    # Wide-C problem (row-major path), also with a ragged tail.
    N2, C2 = 200, 160
    logits2 = jax.random.normal(k3, (N2, C2), dtype=jnp.float32) * 2.0
    labels2 = jax.random.randint(k4, (N2,), 0, C2, dtype=jnp.int32)
    ece2 = ece_loss(logits2, labels2, n_bins=15, block=64, num_splits=2)
    ece2_default = ece_loss(logits2, labels2, n_bins=15)
    ref2 = _ece_reference(logits2, labels2, n_bins=15)

    jax.block_until_ready((ece1, ece1_default, ece2, ece2_default))

    assert ece1.shape == (1,) and ece2.shape == (1,)
    assert jnp.allclose(ece1, ref1, atol=1e-5), (ece1, ref1)
    assert jnp.allclose(ece1_default, ref1, atol=1e-5), (ece1_default, ref1)
    assert jnp.allclose(ece2, ref2, atol=1e-5), (ece2, ref2)
    assert jnp.allclose(ece2_default, ref2, atol=1e-5), (ece2_default, ref2)

    print("KERNEL_OK")
</pallas_src>

<mosaic_0001>
module attributes {stable_mosaic.version = 11 : i64} {
  func.func @_ece_lane_kernel(%arg0: i32, %arg1: i32, %arg2: memref<128x128xf32, #tpu.memory_space<vmem>>, %arg3: memref<1x128xi32, #tpu.memory_space<vmem>>, %arg4: memref<1x15x3xf32, #tpu.memory_space<vmem>>, %arg5: memref<15x1xf32, #tpu.memory_space<vmem>>, %arg6: memref<15x1xf32, #tpu.memory_space<vmem>>, %arg7: memref<15x1xf32, #tpu.memory_space<vmem>>) attributes {dimension_semantics = [#tpu.dimension_semantics<parallel>, #tpu.dimension_semantics<arbitrary>], iteration_bounds = array<i64: 2, 2>, scalar_prefetch = 0 : i64, scratch_operands = 3 : i64, tpu.core_type = #tpu.core_type<tc>, window_params = [{transform_indices = @transform_0, window_bounds = array<i64: 128, 128>}, {transform_indices = @transform_1, window_bounds = array<i64: 1, 128>}, {transform_indices = @transform_2, window_bounds = array<i64: 1, 15, 3>}]} {
    %c0_i32 = arith.constant 0 : i32
    %0 = arith.cmpi eq, %arg1, %c0_i32 : i32
    %1 = arith.extui %0 : i1 to i32
    %c0_i32_0 = arith.constant 0 : i32
    %2 = arith.cmpi ne, %1, %c0_i32_0 : i32
    scf.if %2 {
      %cst = arith.constant 0.000000e+00 : f32
      %12 = vector.broadcast %cst : f32 to vector<15x1xf32>
      %c0 = arith.constant 0 : index
      %c0_3 = arith.constant 0 : index
      %13 = vector.load %arg5[%c0, %c0_3] : memref<15x1xf32, #tpu.memory_space<vmem>>, vector<15x1xf32>
      tpu.vector_store %arg5[%c0, %c0_3], %12 {strides = array<i32>} : memref<15x1xf32, #tpu.memory_space<vmem>>, vector<15x1xf32>,
      %cst_4 = arith.constant 0.000000e+00 : f32
      %14 = vector.broadcast %cst_4 : f32 to vector<15x1xf32>
      %c0_5 = arith.constant 0 : index
      %c0_6 = arith.constant 0 : index
      %15 = vector.load %arg6[%c0_5, %c0_6] : memref<15x1xf32, #tpu.memory_space<vmem>>, vector<15x1xf32>
      tpu.vector_store %arg6[%c0_5, %c0_6], %14 {strides = array<i32>} : memref<15x1xf32, #tpu.memory_space<vmem>>, vector<15x1xf32>,
      %cst_7 = arith.constant 0.000000e+00 : f32
      %16 = vector.broadcast %cst_7 : f32 to vector<15x1xf32>
      %c0_8 = arith.constant 0 : index
      %c0_9 = arith.constant 0 : index
      %17 = vector.load %arg7[%c0_8, %c0_9] : memref<15x1xf32, #tpu.memory_space<vmem>>, vector<15x1xf32>
      tpu.vector_store %arg7[%c0_8, %c0_9], %16 {strides = array<i32>} : memref<15x1xf32, #tpu.memory_space<vmem>>, vector<15x1xf32>,
    } else {
    }
    %c2_i32 = arith.constant 2 : i32
    %3 = arith.muli %arg0, %c2_i32 : i32
    %4 = arith.addi %3, %arg1 : i32
    %c128_i32 = arith.constant 128 : i32
    %5 = arith.muli %4, %c128_i32 : i32
    %c400_i32 = arith.constant 400 : i32
    %6 = arith.cmpi slt, %5, %c400_i32 : i32
    %7 = arith.extui %6 : i1 to i32
    %c0_i32_1 = arith.constant 0 : i32
    %8 = arith.cmpi ne, %7, %c0_i32_1 : i32
    scf.if %8 {
      %c0 = arith.constant 0 : index
      %c0_3 = arith.constant 0 : index
      %12 = vector.load %arg2[%c0, %c0_3] : memref<128x128xf32, #tpu.memory_space<vmem>>, vector<128x128xf32>
      %13 = tpu.transpose %12, [1, 0] : vector<128x128xf32> -> vector<128x128xf32>
      %14 = vector.extract_strided_slice %13 {offsets = [0, 0], sizes = [10, 128], strides = [1, 1]} : vector<128x128xf32> to vector<10x128xf32>
      %cst = arith.constant dense<0xFF800000> : vector<128xf32>
      %15 = vector.multi_reduction <maximumf>, %14, %cst [0] : vector<10x128xf32> to vector<128xf32>
      %16 = vector.shape_cast %15 : vector<128xf32> to vector<1x128xf32>
      %17 = vector.broadcast %16 : vector<1x128xf32> to vector<10x128xf32>
      %18 = arith.subf %14, %17 : vector<10x128xf32>
      %19 = math.exp %18 : vector<10x128xf32>
      %cst_4 = arith.constant dense<0.000000e+00> : vector<128xf32>
      %20 = vector.multi_reduction <add>, %19, %cst_4 [0] : vector<10x128xf32> to vector<128xf32>
      %21 = vector.shape_cast %20 : vector<128xf32> to vector<1x128xf32>
      %22 = tpu.reciprocal %21 : vector<1x128xf32> -> vector<1x128xf32>
      %23 = tpu.iota {dimensions = array<i32: 0>} : vector<10x1xi32>
      %24 = arith.sitofp %23 : vector<10x1xi32> to vector<10x1xf32>
      %25 = vector.broadcast %16 : vector<1x128xf32> to vector<10x128xf32>
      %26 = arith.cmpf oeq, %14, %25 : vector<10x128xf32>
      %cst_5 = arith.constant 1.000000e+01 : f32
      %27 = vector.shape_cast %24 : vector<10x1xf32> to vector<10x1xf32>
      %28 = vector.broadcast %27 : vector<10x1xf32> to vector<10x128xf32>
      %29 = vector.broadcast %cst_5 : f32 to vector<10x128xf32>
      %30 = arith.select %26, %28, %29 : vector<10x128xi1>, vector<10x128xf32>
      %cst_6 = arith.constant dense<0x7F800000> : vector<128xf32>
      %31 = vector.multi_reduction <minimumf>, %30, %cst_6 [0] : vector<10x128xf32> to vector<128xf32>
      %32 = vector.shape_cast %31 : vector<128xf32> to vector<1x128xf32>
      %c0_7 = arith.constant 0 : index
      %c0_8 = arith.constant 0 : index
      %33 = vector.load %arg3[%c0_7, %c0_8] : memref<1x128xi32, #tpu.memory_space<vmem>>, vector<1x128xi32>
      %34 = arith.sitofp %33 : vector<1x128xi32> to vector<1x128xf32>
      %35 = arith.cmpf oeq, %32, %34 : vector<1x128xf32>
      %36 = arith.extui %35 : vector<1x128xi1> to vector<1x128xi32>
      %37 = arith.sitofp %36 : vector<1x128xi32> to vector<1x128xf32>
      %38 = tpu.iota {dimensions = array<i32: 1>} : vector<1x128xi32>
      %39 = vector.broadcast %5 : i32 to vector<1x128xi32>
      %40 = arith.addi %39, %38 : vector<1x128xi32>
      %c400_i32_9 = arith.constant 400 : i32
      %41 = vector.broadcast %c400_i32_9 : i32 to vector<1x128xi32>
      %42 = arith.cmpi slt, %40, %41 : vector<1x128xi32>
      %cst_10 = arith.constant 0.000000e+00 : f32
      %43 = vector.broadcast %cst_10 : f32 to vector<1x128xf32>
      %44 = arith.select %42, %22, %43 : vector<1x128xi1>, vector<1x128xf32>
      %45 = tpu.iota {dimensions = array<i32: 0>} : vector<15x1xi32>
      %46 = arith.sitofp %45 : vector<15x1xi32> to vector<15x1xf32>
      %cst_11 = arith.constant 0.0666666701 : f32
      %47 = vector.broadcast %cst_11 : f32 to vector<15x1xf32>
      %48 = arith.mulf %46, %47 : vector<15x1xf32>
      %cst_12 = arith.constant 1.000000e+00 : f32
      %49 = vector.broadcast %cst_12 : f32 to vector<15x1xf32>
      %50 = arith.addf %46, %49 : vector<15x1xf32>
      %cst_13 = arith.constant 0.0666666701 : f32
      %51 = vector.broadcast %cst_13 : f32 to vector<15x1xf32>
      %52 = arith.mulf %50, %51 : vector<15x1xf32>
      %53 = vector.broadcast %44 : vector<1x128xf32> to vector<15x128xf32>
      %54 = vector.broadcast %48 : vector<15x1xf32> to vector<15x128xf32>
      %55 = arith.cmpf ogt, %53, %54 : vector<15x128xf32>
      %56 = vector.broadcast %44 : vector<1x128xf32> to vector<15x128xf32>
      %57 = vector.broadcast %52 : vector<15x1xf32> to vector<15x128xf32>
      %58 = arith.cmpf ole, %56, %57 : vector<15x128xf32>
      %59 = arith.andi %55, %58 : vector<15x128xi1>
      %60 = arith.extui %59 : vector<15x128xi1> to vector<15x128xi32>
      %61 = arith.sitofp %60 : vector<15x128xi32> to vector<15x128xf32>
      %c0_14 = arith.constant 0 : index
      %c0_15 = arith.constant 0 : index
      %62 = vector.load %arg5[%c0_14, %c0_15] : memref<15x1xf32, #tpu.memory_space<vmem>>, vector<15x1xf32>
      %cst_16 = arith.constant dense<0.000000e+00> : vector<15xf32>
      %63 = vector.multi_reduction <add>, %61, %cst_16 [1] : vector<15x128xf32> to vector<15xf32>
      %64 = vector.shape_cast %63 : vector<15xf32> to vector<15x1xf32>
      %65 = arith.addf %62, %64 : vector<15x1xf32>
      %c0_17 = arith.constant 0 : index
      %c0_18 = arith.constant 0 : index
      %66 = vector.load %arg5[%c0_17, %c0_18] : memref<15x1xf32, #tpu.memory_space<vmem>>, vector<15x1xf32>
      tpu.vector_store %arg5[%c0_17, %c0_18], %65 {strides = array<i32>} : memref<15x1xf32, #tpu.memory_space<vmem>>, vector<15x1xf32>,
      %c0_19 = arith.constant 0 : index
      %c0_20 = arith.constant 0 : index
      %67 = vector.load %arg6[%c0_19, %c0_20] : memref<15x1xf32, #tpu.memory_space<vmem>>, vector<15x1xf32>
      %68 = vector.broadcast %44 : vector<1x128xf32> to vector<15x128xf32>
      %69 = arith.mulf %61, %68 : vector<15x128xf32>
      %cst_21 = arith.constant dense<0.000000e+00> : vector<15xf32>
      %70 = vector.multi_reduction <add>, %69, %cst_21 [1] : vector<15x128xf32> to vector<15xf32>
      %71 = vector.shape_cast %70 : vector<15xf32> to vector<15x1xf32>
      %72 = arith.addf %67, %71 : vector<15x1xf32>
      %c0_22 = arith.constant 0 : index
      %c0_23 = arith.constant 0 : index
      %73 = vector.load %arg6[%c0_22, %c0_23] : memref<15x1xf32, #tpu.memory_space<vmem>>, vector<15x1xf32>
      tpu.vector_store %arg6[%c0_22, %c0_23], %72 {strides = array<i32>} : memref<15x1xf32, #tpu.memory_space<vmem>>, vector<15x1xf32>,
      %c0_24 = arith.constant 0 : index
      %c0_25 = arith.constant 0 : index
      %74 = vector.load %arg7[%c0_24, %c0_25] : memref<15x1xf32, #tpu.memory_space<vmem>>, vector<15x1xf32>
      %75 = vector.broadcast %37 : vector<1x128xf32> to vector<15x128xf32>
      %76 = arith.mulf %61, %75 : vector<15x128xf32>
      %cst_26 = arith.constant dense<0.000000e+00> : vector<15xf32>
      %77 = vector.multi_reduction <add>, %76, %cst_26 [1] : vector<15x128xf32> to vector<15xf32>
      %78 = vector.shape_cast %77 : vector<15xf32> to vector<15x1xf32>
      %79 = arith.addf %74, %78 : vector<15x1xf32>
      %c0_27 = arith.constant 0 : index
      %c0_28 = arith.constant 0 : index
      %80 = vector.load %arg7[%c0_27, %c0_28] : memref<15x1xf32, #tpu.memory_space<vmem>>, vector<15x1xf32>
      tpu.vector_store %arg7[%c0_27, %c0_28], %79 {strides = array<i32>} : memref<15x1xf32, #tpu.memory_space<vmem>>, vector<15x1xf32>,
    } else {
    }
    %c1_i32 = arith.constant 1 : i32
    %9 = arith.cmpi eq, %arg1, %c1_i32 : i32
    %10 = arith.extui %9 : i1 to i32
    %c0_i32_2 = arith.constant 0 : i32
    %11 = arith.cmpi ne, %10, %c0_i32_2 : i32
    scf.if %11 {
      %c0 = arith.constant 0 : index
      %c0_3 = arith.constant 0 : index
      %12 = vector.load %arg5[%c0, %c0_3] : memref<15x1xf32, #tpu.memory_space<vmem>>, vector<15x1xf32>
      %c0_4 = arith.constant 0 : index
      %c0_5 = arith.constant 0 : index
      %13 = vector.load %arg6[%c0_4, %c0_5] : memref<15x1xf32, #tpu.memory_space<vmem>>, vector<15x1xf32>
      %c0_6 = arith.constant 0 : index
      %c0_7 = arith.constant 0 : index
      %14 = vector.load %arg7[%c0_6, %c0_7] : memref<15x1xf32, #tpu.memory_space<vmem>>, vector<15x1xf32>
      %15 = tpu.concatenate %12, %13, %14 in 1 : vector<15x1xf32>, vector<15x1xf32>, vector<15x1xf32> -> vector<15x3xf32>
      %c0_8 = arith.constant 0 : index
      %c0_9 = arith.constant 0 : index
      %c0_10 = arith.constant 0 : index
      %16 = vector.load %arg4[%c0_8, %c0_9, %c0_10] : memref<1x15x3xf32, #tpu.memory_space<vmem>>, vector<1x15x3xf32>
      %17 = vector.shape_cast %16 : vector<1x15x3xf32> to vector<15x3xf32>
      %18 = vector.shape_cast %15 : vector<15x3xf32> to vector<1x15x3xf32>
      tpu.vector_store %arg4[%c0_8, %c0_9, %c0_10], %18 {strides = array<i32>} : memref<1x15x3xf32, #tpu.memory_space<vmem>>, vector<1x15x3xf32>,
    } else {
    }
    return
  }
  func.func @transform_0(%arg0: i32, %arg1: i32) -> (i32, i32) {
    %c2_i32 = arith.constant 2 : i32
    %0 = arith.muli %arg0, %c2_i32 : i32
    %1 = arith.addi %0, %arg1 : i32
    %c3_i32 = arith.constant 3 : i32
    %2 = arith.minsi %1, %c3_i32 : i32
    %c0_i32 = arith.constant 0 : i32
    %c0_i32_0 = arith.constant 0 : i32
    return %2, %c0_i32 : i32, i32
  }
  func.func @transform_1(%arg0: i32, %arg1: i32) -> (i32, i32) {
    %c2_i32 = arith.constant 2 : i32
    %0 = arith.muli %arg0, %c2_i32 : i32
    %1 = arith.addi %0, %arg1 : i32
    %c3_i32 = arith.constant 3 : i32
    %2 = arith.minsi %1, %c3_i32 : i32
    %c0_i32 = arith.constant 0 : i32
    %c0_i32_0 = arith.constant 0 : i32
    return %c0_i32, %2 : i32, i32
  }
  func.func @transform_2(%arg0: i32, %arg1: i32) -> (i32, i32, i32) {
    %c0_i32 = arith.constant 0 : i32
    %c0_i32_0 = arith.constant 0 : i32
    %c0_i32_1 = arith.constant 0 : i32
    return %arg0, %c0_i32, %c0_i32_0 : i32, i32, i32
  }
}

module attributes {stable_mosaic.version = 11 : i64} {
  func.func @_ece_row_kernel(%arg0: i32, %arg1: i32, %arg2: memref<128x10xf32, #tpu.memory_space<vmem>>, %arg3: memref<128x1xi32, #tpu.memory_space<vmem>>, %arg4: memref<1x3x15xf32, #tpu.memory_space<vmem>>, %arg5: memref<1x15xf32, #tpu.memory_space<vmem>>, %arg6: memref<1x15xf32, #tpu.memory_space<vmem>>, %arg7: memref<1x15xf32, #tpu.memory_space<vmem>>) attributes {dimension_semantics = [#tpu.dimension_semantics<parallel>, #tpu.dimension_semantics<arbitrary>], iteration_bounds = array<i64: 2, 2>, scalar_prefetch = 0 : i64, scratch_operands = 3 : i64, tpu.core_type = #tpu.core_type<tc>, window_params = [{transform_indices = @transform_0, window_bounds = array<i64: 128, 10>}, {transform_indices = @transform_1, window_bounds = array<i64: 128, 1>}, {transform_indices = @transform_2, window_bounds = array<i64: 1, 3, 15>}]} {
    %c0_i32 = arith.constant 0 : i32
    %0 = arith.cmpi eq, %arg1, %c0_i32 : i32
    %1 = arith.extui %0 : i1 to i32
    %c0_i32_0 = arith.constant 0 : i32
    %2 = arith.cmpi ne, %1, %c0_i32_0 : i32
    scf.if %2 {
      %cst = arith.constant 0.000000e+00 : f32
      %12 = vector.broadcast %cst : f32 to vector<1x15xf32>
      %c0 = arith.constant 0 : index
      %c0_3 = arith.constant 0 : index
      %13 = vector.load %arg5[%c0, %c0_3] : memref<1x15xf32, #tpu.memory_space<vmem>>, vector<1x15xf32>
      tpu.vector_store %arg5[%c0, %c0_3], %12 {strides = array<i32>} : memref<1x15xf32, #tpu.memory_space<vmem>>, vector<1x15xf32>,
      %cst_4 = arith.constant 0.000000e+00 : f32
      %14 = vector.broadcast %cst_4 : f32 to vector<1x15xf32>
      %c0_5 = arith.constant 0 : index
      %c0_6 = arith.constant 0 : index
      %15 = vector.load %arg6[%c0_5, %c0_6] : memref<1x15xf32, #tpu.memory_space<vmem>>, vector<1x15xf32>
      tpu.vector_store %arg6[%c0_5, %c0_6], %14 {strides = array<i32>} : memref<1x15xf32, #tpu.memory_space<vmem>>, vector<1x15xf32>,
      %cst_7 = arith.constant 0.000000e+00 : f32
      %16 = vector.broadcast %cst_7 : f32 to vector<1x15xf32>
      %c0_8 = arith.constant 0 : index
      %c0_9 = arith.constant 0 : index
      %17 = vector.load %arg7[%c0_8, %c0_9] : memref<1x15xf32, #tpu.memory_space<vmem>>, vector<1x15xf32>
      tpu.vector_store %arg7[%c0_8, %c0_9], %16 {strides = array<i32>} : memref<1x15xf32, #tpu.memory_space<vmem>>, vector<1x15xf32>,
    } else {
    }
    %c2_i32 = arith.constant 2 : i32
    %3 = arith.muli %arg0, %c2_i32 : i32
    %4 = arith.addi %3, %arg1 : i32
    %c128_i32 = arith.constant 128 : i32
    %5 = arith.muli %4, %c128_i32 : i32
    %c400_i32 = arith.constant 400 : i32
    %6 = arith.cmpi slt, %5, %c400_i32 : i32
    %7 = arith.extui %6 : i1 to i32
    %c0_i32_1 = arith.constant 0 : i32
    %8 = arith.cmpi ne, %7, %c0_i32_1 : i32
    scf.if %8 {
      %c0 = arith.constant 0 : index
      %c0_3 = arith.constant 0 : index
      %12 = vector.load %arg2[%c0, %c0_3] : memref<128x10xf32, #tpu.memory_space<vmem>>, vector<128x10xf32>
      %cst = arith.constant dense<0xFF800000> : vector<128xf32>
      %13 = vector.multi_reduction <maximumf>, %12, %cst [1] : vector<128x10xf32> to vector<128xf32>
      %14 = vector.shape_cast %13 : vector<128xf32> to vector<128x1xf32>
      %15 = vector.broadcast %14 : vector<128x1xf32> to vector<128x10xf32>
      %16 = arith.subf %12, %15 : vector<128x10xf32>
      %17 = math.exp %16 : vector<128x10xf32>
      %cst_4 = arith.constant dense<0.000000e+00> : vector<128xf32>
      %18 = vector.multi_reduction <add>, %17, %cst_4 [1] : vector<128x10xf32> to vector<128xf32>
      %19 = vector.shape_cast %18 : vector<128xf32> to vector<128x1xf32>
      %20 = tpu.reciprocal %19 : vector<128x1xf32> -> vector<128x1xf32>
      %21 = tpu.iota {dimensions = array<i32: 1>} : vector<1x10xi32>
      %22 = vector.broadcast %14 : vector<128x1xf32> to vector<128x10xf32>
      %23 = arith.cmpf oeq, %12, %22 : vector<128x10xf32>
      %c10_i32 = arith.constant 10 : i32
      %24 = vector.shape_cast %21 : vector<1x10xi32> to vector<1x10xi32>
      %25 = vector.broadcast %24 : vector<1x10xi32> to vector<128x10xi32>
      %26 = vector.broadcast %c10_i32 : i32 to vector<128x10xi32>
      %27 = arith.select %23, %25, %26 : vector<128x10xi1>, vector<128x10xi32>
      %cst_5 = arith.constant dense<2147483647> : vector<128xi32>
      %28 = vector.multi_reduction <minsi>, %27, %cst_5 [1] : vector<128x10xi32> to vector<128xi32>
      %29 = vector.shape_cast %28 : vector<128xi32> to vector<128x1xi32>
      %c0_6 = arith.constant 0 : index
      %c0_7 = arith.constant 0 : index
      %30 = vector.load %arg3[%c0_6, %c0_7] : memref<128x1xi32, #tpu.memory_space<vmem>>, vector<128x1xi32>
      %31 = arith.cmpi eq, %29, %30 : vector<128x1xi32>
      %32 = arith.extui %31 : vector<128x1xi1> to vector<128x1xi32>
      %33 = arith.sitofp %32 : vector<128x1xi32> to vector<128x1xf32>
      %34 = tpu.iota {dimensions = array<i32: 0>} : vector<128x1xi32>
      %35 = vector.broadcast %5 : i32 to vector<128x1xi32>
      %36 = arith.addi %35, %34 : vector<128x1xi32>
      %c400_i32_8 = arith.constant 400 : i32
      %37 = vector.broadcast %c400_i32_8 : i32 to vector<128x1xi32>
      %38 = arith.cmpi slt, %36, %37 : vector<128x1xi32>
      %cst_9 = arith.constant 0.000000e+00 : f32
      %39 = vector.broadcast %cst_9 : f32 to vector<128x1xf32>
      %40 = arith.select %38, %20, %39 : vector<128x1xi1>, vector<128x1xf32>
      %41 = tpu.iota {dimensions = array<i32: 1>} : vector<1x15xi32>
      %42 = arith.sitofp %41 : vector<1x15xi32> to vector<1x15xf32>
      %cst_10 = arith.constant 0.0666666701 : f32
      %43 = vector.broadcast %cst_10 : f32 to vector<1x15xf32>
      %44 = arith.mulf %42, %43 : vector<1x15xf32>
      %cst_11 = arith.constant 1.000000e+00 : f32
      %45 = vector.broadcast %cst_11 : f32 to vector<1x15xf32>
      %46 = arith.addf %42, %45 : vector<1x15xf32>
      %cst_12 = arith.constant 0.0666666701 : f32
      %47 = vector.broadcast %cst_12 : f32 to vector<1x15xf32>
      %48 = arith.mulf %46, %47 : vector<1x15xf32>
      %49 = vector.broadcast %40 : vector<128x1xf32> to vector<128x15xf32>
      %50 = vector.broadcast %44 : vector<1x15xf32> to vector<128x15xf32>
      %51 = arith.cmpf ogt, %49, %50 : vector<128x15xf32>
      %52 = vector.broadcast %40 : vector<128x1xf32> to vector<128x15xf32>
      %53 = vector.broadcast %48 : vector<1x15xf32> to vector<128x15xf32>
      %54 = arith.cmpf ole, %52, %53 : vector<128x15xf32>
      %55 = arith.andi %51, %54 : vector<128x15xi1>
      %56 = arith.extui %55 : vector<128x15xi1> to vector<128x15xi32>
      %57 = arith.sitofp %56 : vector<128x15xi32> to vector<128x15xf32>
      %c0_13 = arith.constant 0 : index
      %c0_14 = arith.constant 0 : index
      %58 = vector.load %arg5[%c0_13, %c0_14] : memref<1x15xf32, #tpu.memory_space<vmem>>, vector<1x15xf32>
      %cst_15 = arith.constant dense<0.000000e+00> : vector<15xf32>
      %59 = vector.multi_reduction <add>, %57, %cst_15 [0] : vector<128x15xf32> to vector<15xf32>
      %60 = vector.shape_cast %59 : vector<15xf32> to vector<1x15xf32>
      %61 = arith.addf %58, %60 : vector<1x15xf32>
      %c0_16 = arith.constant 0 : index
      %c0_17 = arith.constant 0 : index
      %62 = vector.load %arg5[%c0_16, %c0_17] : memref<1x15xf32, #tpu.memory_space<vmem>>, vector<1x15xf32>
      tpu.vector_store %arg5[%c0_16, %c0_17], %61 {strides = array<i32>} : memref<1x15xf32, #tpu.memory_space<vmem>>, vector<1x15xf32>,
      %c0_18 = arith.constant 0 : index
      %c0_19 = arith.constant 0 : index
      %63 = vector.load %arg6[%c0_18, %c0_19] : memref<1x15xf32, #tpu.memory_space<vmem>>, vector<1x15xf32>
      %64 = vector.broadcast %40 : vector<128x1xf32> to vector<128x15xf32>
      %65 = arith.mulf %57, %64 : vector<128x15xf32>
      %cst_20 = arith.constant dense<0.000000e+00> : vector<15xf32>
      %66 = vector.multi_reduction <add>, %65, %cst_20 [0] : vector<128x15xf32> to vector<15xf32>
      %67 = vector.shape_cast %66 : vector<15xf32> to vector<1x15xf32>
      %68 = arith.addf %63, %67 : vector<1x15xf32>
      %c0_21 = arith.constant 0 : index
      %c0_22 = arith.constant 0 : index
      %69 = vector.load %arg6[%c0_21, %c0_22] : memref<1x15xf32, #tpu.memory_space<vmem>>, vector<1x15xf32>
      tpu.vector_store %arg6[%c0_21, %c0_22], %68 {strides = array<i32>} : memref<1x15xf32, #tpu.memory_space<vmem>>, vector<1x15xf32>,
      %c0_23 = arith.constant 0 : index
      %c0_24 = arith.constant 0 : index
      %70 = vector.load %arg7[%c0_23, %c0_24] : memref<1x15xf32, #tpu.memory_space<vmem>>, vector<1x15xf32>
      %71 = vector.broadcast %33 : vector<128x1xf32> to vector<128x15xf32>
      %72 = arith.mulf %57, %71 : vector<128x15xf32>
      %cst_25 = arith.constant dense<0.000000e+00> : vector<15xf32>
      %73 = vector.multi_reduction <add>, %72, %cst_25 [0] : vector<128x15xf32> to vector<15xf32>
      %74 = vector.shape_cast %73 : vector<15xf32> to vector<1x15xf32>
      %75 = arith.addf %70, %74 : vector<1x15xf32>
      %c0_26 = arith.constant 0 : index
      %c0_27 = arith.constant 0 : index
      %76 = vector.load %arg7[%c0_26, %c0_27] : memref<1x15xf32, #tpu.memory_space<vmem>>, vector<1x15xf32>
      tpu.vector_store %arg7[%c0_26, %c0_27], %75 {strides = array<i32>} : memref<1x15xf32, #tpu.memory_space<vmem>>, vector<1x15xf32>,
    } else {
    }
    %c1_i32 = arith.constant 1 : i32
    %9 = arith.cmpi eq, %arg1, %c1_i32 : i32
    %10 = arith.extui %9 : i1 to i32
    %c0_i32_2 = arith.constant 0 : i32
    %11 = arith.cmpi ne, %10, %c0_i32_2 : i32
    scf.if %11 {
      %c0 = arith.constant 0 : index
      %c0_3 = arith.constant 0 : index
      %12 = vector.load %arg5[%c0, %c0_3] : memref<1x15xf32, #tpu.memory_space<vmem>>, vector<1x15xf32>
      %c0_4 = arith.constant 0 : index
      %c0_5 = arith.constant 0 : index
      %13 = vector.load %arg6[%c0_4, %c0_5] : memref<1x15xf32, #tpu.memory_space<vmem>>, vector<1x15xf32>
      %c0_6 = arith.constant 0 : index
      %c0_7 = arith.constant 0 : index
      %14 = vector.load %arg7[%c0_6, %c0_7] : memref<1x15xf32, #tpu.memory_space<vmem>>, vector<1x15xf32>
      %15 = tpu.concatenate %12, %13, %14 in 0 : vector<1x15xf32>, vector<1x15xf32>, vector<1x15xf32> -> vector<3x15xf32>
      %c0_8 = arith.constant 0 : index
      %c0_9 = arith.constant 0 : index
      %c0_10 = arith.constant 0 : index
      %16 = vector.load %arg4[%c0_8, %c0_9, %c0_10] : memref<1x3x15xf32, #tpu.memory_space<vmem>>, vector<1x3x15xf32>
      %17 = vector.shape_cast %16 : vector<1x3x15xf32> to vector<3x15xf32>
      %18 = vector.shape_cast %15 : vector<3x15xf32> to vector<1x3x15xf32>
      tpu.vector_store %arg4[%c0_8, %c0_9, %c0_10], %18 {strides = array<i32>} : memref<1x3x15xf32, #tpu.memory_space<vmem>>, vector<1x3x15xf32>,
    } else {
    }
    return
  }
  func.func @transform_0(%arg0: i32, %arg1: i32) -> (i32, i32) {
    %c2_i32 = arith.constant 2 : i32
    %0 = arith.muli %arg0, %c2_i32 : i32
    %1 = arith.addi %0, %arg1 : i32
    %c3_i32 = arith.constant 3 : i32
    %2 = arith.minsi %1, %c3_i32 : i32
    %c0_i32 = arith.constant 0 : i32
    %c0_i32_0 = arith.constant 0 : i32
    return %2, %c0_i32 : i32, i32
  }
  func.func @transform_1(%arg0: i32, %arg1: i32) -> (i32, i32) {
    %c2_i32 = arith.constant 2 : i32
    %0 = arith.muli %arg0, %c2_i32 : i32
    %1 = arith.addi %0, %arg1 : i32
    %c3_i32 = arith.constant 3 : i32
    %2 = arith.minsi %1, %c3_i32 : i32
    %c0_i32 = arith.constant 0 : i32
    %c0_i32_0 = arith.constant 0 : i32
    return %2, %c0_i32 : i32, i32
  }
  func.func @transform_2(%arg0: i32, %arg1: i32) -> (i32, i32, i32) {
    %c0_i32 = arith.constant 0 : i32
    %c0_i32_0 = arith.constant 0 : i32
    %c0_i32_1 = arith.constant 0 : i32
    return %arg0, %c0_i32, %c0_i32_0 : i32, i32, i32
  }
}

</mosaic_0001>

<llo_original>
// kernel: tpu_custom_call.1
$region0: #{tpu_custom_call.1}
  #allocation0 [shape = 'u32[]', space=smem, size = 0x4, offset = 0x4, fixed_abs, tag = 'smem constant byte address 0x4 - core index']
  #allocation1 [shape = 'u32[144,128]{1,0:T(1,128)}', space=vmem, size = 0x12000, scoped, tag = 'internal scratch']
  #allocation2 [shape = 'f32[15,1]{1,0:T(8,128)}', space=vmem, size = 0x2000, scoped, tag = 'scratch operand']
  #allocation3 [shape = 'f32[15,1]{1,0:T(8,128)}', space=vmem, size = 0x2000, scoped, tag = 'scratch operand']
  #allocation4 [shape = 'f32[15,1]{1,0:T(8,128)}', space=vmem, size = 0x2000, scoped, tag = 'scratch operand']
  %s0 = inlined_call_operand.vmem [shape: f32[400,10], index: 0, kind: input, shape index: {}]
  %s1 = inlined_call_operand.vmem [shape: s32[1,400], index: 1, kind: input, shape index: {}]
  %s2 = inlined_call_operand.vmem [shape: f32[2,15,3], index: 2, kind: output, shape index: {}]
  %s3 = sld [smem:[#allocation0]]
  $region53: #{tpu_custom_call.1} parent=0
    _
  %s5 = ssub.s32 1, %s3
  %s6 = scalar_select 0, %s5, %s3
  loop: start=0, step=1, limit=6
  $region2: #{tpu_custom_call.1} parent=0 // loop_pre_header
    _
  $region3: #{tpu_custom_call.1} parent=0 // loop_header
    %s8 = sphi 0, %s12
    %p9 = scmp.ge.s32.totalorder %s8, 6
    %s15 = sphi 0, %s27
    %s16 = sphi 0, %s23
    %s17 = sphi 0, %s15
    %s18 = sphi 0, %s16
    %s19 = sphi 0, %s17
    %s20 = sphi 0, %s18
    %s38 = sphi 0, %s40
    %s41 = sphi 0, %s38
    %s42 = sphi 0, %s41
    %s58 = sphi 0, %s42
    %s72 = sphi 0, %s74
    %s75 = sphi 0, %s72
    %s76 = sphi 0, %s75
    %s92 = sphi 0, %s76
    %s98 = sphi 0, %s100
    %s101 = sphi 0, %s98
    %s102 = sphi 0, %s101
    %s118 = sphi 0, %s102
  $region4: #{tpu_custom_call.1} parent=0 // loop_header_branch
    %11 = sbr.rel (%p9) target = $region8
  $region5: #{tpu_custom_call.1} parent=0 // loop_body
    %s13 = ssub.s32 %s8, 1
    %s14 = ssub.s32 %s8, 2
    %s21 = sadd.s32 1, %s16
    %p22 = scmp.ge.s32.totalorder %s21, 2
    %s23 = scalar_select %p22, 0, %s21
    %s24 = sadd.s32 1, %s15
    %s25 = scalar_select %p22, %s24, %s15
    %p26 = scmp.ge.s32.totalorder %s25, 2
    %s27 = scalar_select %p26, 0, %s25
    %s28 = smul.u32 %s15, 2
    %s29 = sadd.s32 %s28, %s16
    %p30 = scmp.lt.s32.totalorder %s29, 3
    %s31 = scalar_select %p30, %s29, 3
    %s32 = smul.u32 %s27, 2
    %s33 = sadd.s32 %s32, %s23
    %p34 = scmp.lt.s32.totalorder %s33, 3
    %s35 = scalar_select %p34, %s33, 3
    %s36 = ssub.s32 %s31, %s35
    %p37 = scmp.eq.s32.totalorder %s36, 0
    %s39 = sadd.s32 %s38, 1
    %s40 = scalar_select %p37, %s38, %s39
    %p43 = pneg %p37
    %p44 = scmp.eq.s32.totalorder %s8, 3
    %p45 = por %p43, %p44
    %p46 = scmp.ne.s32.totalorder %s38, %s41
    %p47 = scmp.eq.s32.totalorder %s8, 0
    %p48 = por %p46, %p47
    %p49 = scmp.ne.s32.totalorder %s38, %s41
    %p50 = scmp.eq.s32.totalorder %s13, 3
    %p51 = por %p49, %p50
    %p52 = scmp.ne.s32.totalorder %s41, %s42
    %p53 = scmp.eq.s32.totalorder %s13, 0
    %p54 = por %p52, %p53
    %p55 = scmp.ne.s32.totalorder %s41, %s42
    %p56 = scmp.eq.s32.totalorder %s14, 3
    %p57 = por %p55, %p56
    %p59 = scmp.ne.s32.totalorder %s42, %s58
    %p60 = scmp.eq.s32.totalorder %s14, 0
    %p61 = por %p59, %p60
    %s62 = smul.u32 %s15, 2
    %s63 = sadd.s32 %s62, %s16
    %p64 = scmp.lt.s32.totalorder %s63, 3
    %s65 = scalar_select %p64, %s63, 3
    %s66 = smul.u32 %s27, 2
    %s67 = sadd.s32 %s66, %s23
    %p68 = scmp.lt.s32.totalorder %s67, 3
    %s69 = scalar_select %p68, %s67, 3
    %s70 = ssub.s32 %s65, %s69
    %p71 = scmp.eq.s32.totalorder %s70, 0
    %s73 = sadd.s32 %s72, 1
    %s74 = scalar_select %p71, %s72, %s73
    %p77 = pneg %p71
    %p78 = scmp.eq.s32.totalorder %s8, 3
    %p79 = por %p77, %p78
    %p80 = scmp.ne.s32.totalorder %s72, %s75
    %p81 = scmp.eq.s32.totalorder %s8, 0
    %p82 = por %p80, %p81
    %p83 = scmp.ne.s32.totalorder %s72, %s75
    %p84 = scmp.eq.s32.totalorder %s13, 3
    %p85 = por %p83, %p84
    %p86 = scmp.ne.s32.totalorder %s75, %s76
    %p87 = scmp.eq.s32.totalorder %s13, 0
    %p88 = por %p86, %p87
    %p89 = scmp.ne.s32.totalorder %s75, %s76
    %p90 = scmp.eq.s32.totalorder %s14, 3
    %p91 = por %p89, %p90
    %p93 = scmp.ne.s32.totalorder %s76, %s92
    %p94 = scmp.eq.s32.totalorder %s14, 0
    %p95 = por %p93, %p94
    %s96 = ssub.s32 %s15, %s27
    %p97 = scmp.eq.s32.totalorder %s96, 0
    %s99 = sadd.s32 %s98, 1
    %s100 = scalar_select %p97, %s98, %s99
    %p103 = pneg %p97
    %p104 = scmp.eq.s32.totalorder %s8, 3
    %p105 = por %p103, %p104
    %p106 = scmp.ne.s32.totalorder %s98, %s101
    %p107 = scmp.eq.s32.totalorder %s8, 0
    %p108 = por %p106, %p107
    %p109 = scmp.ne.s32.totalorder %s98, %s101
    %p110 = scmp.eq.s32.totalorder %s13, 3
    %p111 = por %p109, %p110
    %p112 = scmp.ne.s32.totalorder %s101, %s102
    %p113 = scmp.eq.s32.totalorder %s13, 0
    %p114 = por %p112, %p113
    %p115 = scmp.ne.s32.totalorder %s101, %s102
    %p116 = scmp.eq.s32.totalorder %s14, 3
    %p117 = por %p115, %p116
    %p119 = scmp.ne.s32.totalorder %s102, %s118
    %p120 = scmp.eq.s32.totalorder %s14, 0
    %p121 = por %p119, %p120
    %p122 = scmp.le.s32.totalorder 1, %s8
    %p123 = scmp.lt.s32.totalorder %s8, 5
    %p124 = pnand %p122, %p123
    %p125 = pneg %p124
    // Predicated region
    $region9: #{tpu_custom_call.1} parent=5 // pred_check
      _
    $region10: #{tpu_custom_call.1} parent=5 // pred_check_branch
      %127 = sbr.rel (%p124) target = $region12
    $region11: #{tpu_custom_call.1} parent=5 // pred_region
      %s128 = ssub.s32 %s8, 1
    $region12: #{tpu_custom_call.1} parent=5 // pred_fallthru
      _
    %p129 = scmp.lt.s32.totalorder %s8, 4
    // Predicated region
    $region13: #{tpu_custom_call.1} parent=5 // pred_check
      %p130 = pneg %p129
    $region14: #{tpu_custom_call.1} parent=5 // pred_check_branch
      %132 = sbr.rel (%p130) target = $region16
    $region15: #{tpu_custom_call.1} parent=5 // pred_region
      // Predicated region
      $region17: #{tpu_custom_call.1} parent=15 // pred_check
        %p133 = pneg %p48
      $region18: #{tpu_custom_call.1} parent=15 // pred_check_branch
        %135 = sbr.rel (%p133) target = $region20
      $region19: #{tpu_custom_call.1} parent=15 // pred_region
        %s136 = smul.u32 %s15, 2
        %s137 = sadd.s32 %s136, %s16
        %p138 = scmp.lt.s32.totalorder %s137, 3
        %s139 = scalar_select %p138, %s137, 3
        %s140 = smul.u32 16, %s139
        %s141 = ssub.s32 50, %s140
        %p142 = scmp.lt.s32.totalorder %s141, 16
        %s143 = scalar_select %p142, %s141, 16
        %s144 = smul.u32 128, %s143
        %p145 = scmp.lt.s32.totalorder %s140, 49
        %s146 = scalar_select %p145, %s140, 49
        %s147 = smul.addr %s146, 8
        %s148 = scalar_lea.vmem %s0, %s147
        %s149 = smul.u32 %s15, 2
        %s150 = sadd.s32 %s149, %s16
        %p151 = scmp.lt.s32.totalorder %s150, 3
        %s152 = scalar_select %p151, %s150, 3
        %s153 = smul.u32 16, %s152
        %s154 = ssub.s32 50, %s153
        %p155 = scmp.lt.s32.totalorder %s154, 16
        %s156 = scalar_select %p155, %s154, 16
        %s157 = smul.u32 128, %s156
      $region20: #{tpu_custom_call.1} parent=15 // pred_fallthru
        _
      // Predicated region
      $region21: #{tpu_custom_call.1} parent=15 // pred_check
        %p158 = pneg %p82
      $region22: #{tpu_custom_call.1} parent=15 // pred_check_branch
        %160 = sbr.rel (%p158) target = $region24
      $region23: #{tpu_custom_call.1} parent=15 // pred_region
        %s161 = smul.u32 %s15, 2
        %s162 = sadd.s32 %s161, %s16
        %p163 = scmp.lt.s32.totalorder %s162, 3
        %s164 = scalar_select %p163, %s162, 3
        %p165 = scmp.lt.s32.totalorder %s164, 3
        %s166 = scalar_select %p165, %s164, 3
        %s167 = scalar_lea.vmem %s1, %s166
        %s168 = smul.u32 %s15, 2
        %s169 = sadd.s32 %s168, %s16
        %p170 = scmp.lt.s32.totalorder %s169, 3
        %s171 = scalar_select %p170, %s169, 3
      $region24: #{tpu_custom_call.1} parent=15 // pred_fallthru
        _
    $region16: #{tpu_custom_call.1} parent=5 // pred_fallthru
      _
    %p172 = scmp.le.s32.totalorder 1, %s8
    %p173 = scmp.lt.s32.totalorder %s8, 5
    %p174 = pnand %p172, %p173
    %p175 = pneg %p174
    // Predicated region
    $region25: #{tpu_custom_call.1} parent=5 // pred_check
      _
    $region26: #{tpu_custom_call.1} parent=5 // pred_check_branch
      %177 = sbr.rel (%p174) target = $region28
    $region27: #{tpu_custom_call.1} parent=5 // pred_region
      %s178 = ssub.s32 %s8, 1
      %s179 = smul.u32 %s17, 2
      %s180 = sadd.s32 %s179, %s18
      %p181 = scmp.lt.s32.totalorder %s180, 3
      %s182 = scalar_select %p181, %s180, 3
      %s183 = smul.u32 16, %s182
      %s184 = ssub.s32 50, %s183
      %p185 = scmp.lt.s32.totalorder %s184, 16
      %s186 = scalar_select %p185, %s184, 16
      %s187 = smul.u32 128, %s186
      %p188 = scmp.lt.s32.totalorder %s183, 49
      %s189 = scalar_select %p188, %s183, 49
      %s190 = smul.addr %s189, 8
      %s191 = scalar_lea.vmem %s0, %s190
      %p192 = pneg %p54
      %p193 = pneg %p51
      %s194 = smul.u32 %s17, 2
      %s195 = sadd.s32 %s194, %s18
      %p196 = scmp.lt.s32.totalorder %s195, 3
      %s197 = scalar_select %p196, %s195, 3
      %p198 = scmp.lt.s32.totalorder %s197, 3
      %s199 = scalar_select %p198, %s197, 3
      %s200 = scalar_lea.vmem %s1, %s199
      %p201 = pneg %p88
      %p202 = pneg %p85
      %p203 = pneg %p114
      %p204 = pneg %p111
      %p205 = scmp.lt.s32.totalorder %s17, 1
      %s206 = scalar_select %p205, %s17, 1
      %s207 = smul.addr %s206, 2
      %s208 = smul.addr %s207, 8
      %s209 = scalar_lea.vmem %s2, %s208
      %s210 = smul.u32 %s17, 2
      %s211 = sadd.s32 %s210, %s18
      %p212 = scmp.lt.s32.totalorder %s211, 3
      %s213 = scalar_select %p212, %s211, 3
      %s214 = smul.u32 16, %s213
      %s215 = ssub.s32 50, %s214
      %p216 = scmp.lt.s32.totalorder %s215, 16
      %s217 = scalar_select %p216, %s215, 16
      %s218 = smul.u32 128, %s217
      %p219 = scmp.lt.s32.totalorder %s214, 49
      %s220 = scalar_select %p219, %s214, 49
      %s221 = smul.addr %s220, 8
      %s222 = scalar_lea.vmem %s0, %s221
      %s223 = smul.u32 %s17, 2
      %s224 = sadd.s32 %s223, %s18
      %p225 = scmp.lt.s32.totalorder %s224, 3
      %s226 = scalar_select %p225, %s224, 3
      %s227 = smul.u32 16, %s226
      %s228 = ssub.s32 50, %s227
      %p229 = scmp.lt.s32.totalorder %s228, 16
      %s230 = scalar_select %p229, %s228, 16
      %s231 = smul.u32 128, %s230
      %s232 = smul.u32 %s17, 2
      %s233 = sadd.s32 %s232, %s18
      %p234 = scmp.lt.s32.totalorder %s233, 3
      %s235 = scalar_select %p234, %s233, 3
      %p236 = scmp.lt.s32.totalorder %s235, 3
      %s237 = scalar_select %p236, %s235, 3
      %s238 = scalar_lea.vmem %s1, %s237
      %s239 = smul.u32 %s17, 2
      %s240 = sadd.s32 %s239, %s18
      %p241 = scmp.lt.s32.totalorder %s240, 3
      %s242 = scalar_select %p241, %s240, 3
      %p243 = scmp.lt.s32.totalorder %s17, 1
      %s244 = scalar_select %p243, %s17, 1
      %s245 = smul.addr %s244, 2
      %s246 = smul.addr %s245, 8
      %s247 = scalar_lea.vmem %s2, %s246
      %p248 = scmp.eq.s32.totalorder %s18, 0
      // Predicated region
      $region29: #{tpu_custom_call.1} parent=27 // pred_check
        %p249 = pneg %p248
      $region30: #{tpu_custom_call.1} parent=27 // pred_check_branch
        %251 = sbr.rel (%p249) target = $region32
      $region31: #{tpu_custom_call.1} parent=27 // pred_region
        %vm252 = vcmask 7168
        %253 = vst.msk [vmem:[#allocation2] sm:$0xff] %vm252, 0.0
        %vm254 = vcmask 6144
        %255 = vst.msk [vmem:[#allocation2 + $0x8] sm:$0x7f] %vm254, 0.0
        %256 = vst.msk [vmem:[#allocation3] sm:$0xff] %vm252, 0.0
        %257 = vst.msk [vmem:[#allocation3 + $0x8] sm:$0x7f] %vm254, 0.0
        %258 = vst.msk [vmem:[#allocation4] sm:$0xff] %vm252, 0.0
        %259 = vst.msk [vmem:[#allocation4 + $0x8] sm:$0x7f] %vm254, 0.0
      $region32: #{tpu_custom_call.1} parent=27 // pred_fallthru
        _
      %s260 = smul.u32 %s17, 2
      %s261 = sadd.s32 %s260, %s18
      %s262 = smul.u32 %s261, 128
      %p263 = scmp.lt.s32.totalorder %s262, 400
      // Predicated region
      $region33: #{tpu_custom_call.1} parent=27 // pred_check
        %p264 = pneg %p263
      $region34: #{tpu_custom_call.1} parent=27 // pred_check_branch
        %266 = sbr.rel (%p264) target = $region36
      $region35: #{tpu_custom_call.1} parent=27 // pred_region
        %v267 = vld [vmem:[%s222] sm:$0xff]
        %v268 = vld [vmem:[%s222 + $0x8] sm:$0xff]
        %v269 = vld [vmem:[%s222 + $0x10] sm:$0xff]
        %v270 = vld [vmem:[%s222 + $0x18] sm:$0xff]
        %v271 = vld [vmem:[%s222 + $0x20] sm:$0xff]
        %v272 = vld [vmem:[%s222 + $0x28] sm:$0xff]
        %v273 = vld [vmem:[%s222 + $0x30] sm:$0xff]
        %v274 = vld [vmem:[%s222 + $0x38] sm:$0xff]
        %v275 = vld [vmem:[%s222 + $0x40] sm:$0xff]
        %v276 = vld [vmem:[%s222 + $0x48] sm:$0xff]
        %v277 = vld [vmem:[%s222 + $0x50] sm:$0xff]
        %v278 = vld [vmem:[%s222 + $0x58] sm:$0xff]
        %v279 = vld [vmem:[%s222 + $0x60] sm:$0xff]
        %v280 = vld [vmem:[%s222 + $0x68] sm:$0xff]
        %v281 = vld [vmem:[%s222 + $0x70] sm:$0xff]
        %v282 = vld [vmem:[%s222 + $0x78] sm:$0xff]
        %283 = vxpose.xlu0.b32.start [1/16] %v267, 128
        %284 = vxpose.xlu0.b32.cont [2/16] %v268, 128
        %285 = vxpose.xlu0.b32.cont [3/16] %v269, 128
        %286 = vxpose.xlu0.b32.cont [4/16] %v270, 128
        %287 = vxpose.xlu0.b32.cont [5/16] %v271, 128
        %288 = vxpose.xlu0.b32.cont [6/16] %v272, 128
        %289 = vxpose.xlu0.b32.cont [7/16] %v273, 128
        %290 = vxpose.xlu0.b32.cont [8/16] %v274, 128
        %291 = vxpose.xlu0.b32.cont [9/16] %v275, 128
        %292 = vxpose.xlu0.b32.cont [10/16] %v276, 128
        %293 = vxpose.xlu0.b32.cont [11/16] %v277, 128
        %294 = vxpose.xlu0.b32.cont [12/16] %v278, 128
        %295 = vxpose.xlu0.b32.cont [13/16] %v279, 128
        %296 = vxpose.xlu0.b32.cont [14/16] %v280, 128
        %297 = vxpose.xlu0.b32.cont [15/16] %v281, 128
        %298 = vxpose.xlu0.b32.end [16/16] %v282, 128
        %v299 = vpop.trf.xlu0
        %v300 = vpop.trf.xlu0
        %v301 = vpop.trf.xlu0
        %v302 = vpop.trf.xlu0
        %v303 = vpop.trf.xlu0
        %v304 = vpop.trf.xlu0
        %v305 = vpop.trf.xlu0
        %v306 = vpop.trf.xlu0
        %v307 = vpop.trf.xlu0
        %v308 = vpop.trf.xlu0
        %v309 = vpop.trf.xlu0
        %v310 = vpop.trf.xlu0
        %v311 = vpop.trf.xlu0
        %v312 = vpop.trf.xlu0
        %v313 = vpop.trf.xlu0
        %v314 = vpop.trf.xlu0
        %vm315 = vcmask 1041408
        %v316 = vsel %vm315, %v300, -inf
        %v317 = vmax.f32 %v299, %v316
        %v318 = vrot.slane %v317, 4
        %v319 = vmax.f32 %v317, %v318
        %v320 = vrot.slane %v319, 2
        %v321 = vmax.f32 %v319, %v320
        %v322 = vrot.slane %v321, 1
        %v323 = vmax.f32 %v321, %v322
        %v324 = vsub.f32 %v299, %v323
        %v325 = vsub.f32 %v300, %v323
        %v326 = vmul.f32 %v324, 1.442695
        %v327 = vpow.pop %v326
        %v328 = vmul.f32 %v325, 1.442695
        %v329 = vpow.pop %v328
        %v330 = vsel %vm315, %v329, 0.0
        %v331 = vadd.f32 %v327, %v330
        %v332 = vrot.slane %v331, 4
        %v333 = vadd.f32 %v331, %v332
        %v334 = vrot.slane %v333, 2
        %v335 = vadd.f32 %v333, %v334
        %v336 = vrot.slane %v335, 1
        %v337 = vadd.f32 %v335, %v336
        %v338 = vrcp.pop %v337
        %v339 = vlaneseq
        %v340 = vshrl.u32 %v339, 7
        %v341 = vadd.s32 %v340, 8
        %v342 = vcvt.s32.f32 %v340
        %v343 = vcvt.s32.f32 %v341
        %vm344 = vcmp.eq.f32.partialorder %v299, %v323
        %vm345 = vcmp.eq.f32.partialorder %v300, %v323
        %v346 = vsel %vm344, %v342, 10.0
        %v347 = vsel %vm345, %v343, 10.0
        %v348 = vsel %vm315, %v347, inf
        %v349 = vmin.f32 %v346, %v348
        %v350 = vrot.slane %v349, 4
        %v351 = vmin.f32 %v349, %v350
        %v352 = vrot.slane %v351, 2
        %v353 = vmin.f32 %v351, %v352
        %v354 = vrot.slane %v353, 1
        %v355 = vmin.f32 %v353, %v354
        %v356 = vld [vmem:[%s238] sm:$0x1]
        %v357 = vcvt.s32.f32 %v356
        %vm358 = vcmp.eq.f32.partialorder %v355, %v357
        %v359 = vsel %vm358, 1, 0
        %v360 = vcvt.s32.f32 %v359
        %v361 = vlaneseq
        %v362 = vand.u32 %v361, 127
        %v363 = vstv %s262
        %v364 = vadd.s32 %v363, %v362
        %vm365 = vcmp.lt.s32.totalorder %v364, 400
        %v366 = vsel %vm365, %v338, 0.0
        %v367 = vmul.f32 %v342, 0.06666667
        %v368 = vmul.f32 %v343, 0.06666667
        %v369 = vadd.f32 %v342, 1.0
        %v370 = vadd.f32 %v343, 1.0
        %v371 = vmul.f32 %v369, 0.06666667
        %v372 = vmul.f32 %v370, 0.06666667
        %vm373 = vcmp.gt.f32.partialorder %v366, %v367
        %vm374 = vcmp.gt.f32.partialorder %v366, %v368
        %vm375 = vcmp.le.f32.partialorder %v366, %v371
        %vm376 = vcmp.le.f32.partialorder %v366, %v372
        %vm377 = vmand %vm373, %vm375
        %vm378 = vmand %vm374, %vm376
        %v379 = vsel %vm377, 1, 0
        %v380 = vsel %vm378, 1, 0
        %v381 = vcvt.s32.f32 %v379
        %v382 = vcvt.s32.f32 %v380
        %v383 = vld [vmem:[#allocation2] sm:$0xff]
        %v384 = vld [vmem:[#allocation2 + $0x8] sm:$0x7f]
        %385 = vadd.xlane.f32.xlu0 %v381
        %v386 = vpop.xlane.xlu0 %385
        %vm387 = vcmask 1046528
        %v388 = vsel %vm387, %v382, 0.0
        %389 = vadd.xlane.f32.xlu0 %v388
        %v390 = vpop.xlane.xlu0 %389
        %v391 = vadd.f32 %v383, %v386
        %v392 = vadd.f32 %v384, %v390
        %vm393 = vcmask 7168
        %394 = vst.msk [vmem:[#allocation2] sm:$0xff] %vm393, %v391
        %vm395 = vcmask 6144
        %396 = vst.msk [vmem:[#allocation2 + $0x8] sm:$0x7f] %vm395, %v392
        %v397 = vld [vmem:[#allocation3] sm:$0xff]
        %v398 = vld [vmem:[#allocation3 + $0x8] sm:$0x7f]
        %v399 = vmul.f32 %v381, %v366
        %v400 = vmul.f32 %v382, %v366
        %401 = vadd.xlane.f32.xlu0 %v399
        %v402 = vpop.xlane.xlu0 %401
        %v403 = vsel %vm387, %v400, 0.0
        %404 = vadd.xlane.f32.xlu0 %v403
        %v405 = vpop.xlane.xlu0 %404
        %v406 = vadd.f32 %v397, %v402
        %v407 = vadd.f32 %v398, %v405
        %408 = vst.msk [vmem:[#allocation3] sm:$0xff] %vm393, %v406
        %409 = vst.msk [vmem:[#allocation3 + $0x8] sm:$0x7f] %vm395, %v407
        %v410 = vld [vmem:[#allocation4] sm:$0xff]
        %v411 = vld [vmem:[#allocation4 + $0x8] sm:$0x7f]
        %v412 = vlaneseq
        %v413 = vshrl.u32 %v412, 7
        %v414 = vsub.s32 0, %v413
        %v415 = vrot.slane %v360, %v414
        %v416 = vmul.f32 %v381, %v415
        %v417 = vmul.f32 %v382, %v415
        %418 = vadd.xlane.f32.xlu0 %v416
        %v419 = vpop.xlane.xlu0 %418
        %v420 = vsel %vm387, %v417, 0.0
        %421 = vadd.xlane.f32.xlu0 %v420
        %v422 = vpop.xlane.xlu0 %421
        %v423 = vadd.f32 %v410, %v419
        %v424 = vadd.f32 %v411, %v422
        %425 = vst.msk [vmem:[#allocation4] sm:$0xff] %vm393, %v423
        %426 = vst.msk [vmem:[#allocation4 + $0x8] sm:$0x7f] %vm395, %v424
      $region36: #{tpu_custom_call.1} parent=27 // pred_fallthru
        _
      %p427 = scmp.eq.s32.totalorder %s18, 1
      // Predicated region
      $region37: #{tpu_custom_call.1} parent=27 // pred_check
        %p428 = pneg %p427
      $region38: #{tpu_custom_call.1} parent=27 // pred_check_branch
        %430 = sbr.rel (%p428) target = $region40
      $region39: #{tpu_custom_call.1} parent=27 // pred_region
        %v431 = vld [vmem:[#allocation2] sm:$0xff]
        %v432 = vld [vmem:[#allocation2 + $0x8] sm:$0x7f]
        %v433 = vld [vmem:[#allocation3] sm:$0xff]
        %v434 = vld [vmem:[#allocation3 + $0x8] sm:$0x7f]
        %v435 = vld [vmem:[#allocation4] sm:$0xff]
        %v436 = vld [vmem:[#allocation4 + $0x8] sm:$0x7f]
        %439 = vrot.lane.b32.xlu0 %v433, 1
        %v440 = vpop.permute.xlu0 %439
        %441 = vrot.lane.b32.xlu0 %v434, 1
        %v442 = vpop.permute.xlu0 %441
        %447 = vrot.lane.b32.xlu0 %v435, 2
        %v448 = vpop.permute.xlu0 %447
        %449 = vrot.lane.b32.xlu0 %v436, 2
        %v450 = vpop.permute.xlu0 %449
        %vm453 = vcmask 7168
        %v454 = vsel %vm453, %v431, %v440
        %v455 = vsel %vm453, %v432, %v442
        %vm456 = vcmask 15360
        %v457 = vsel %vm456, %v454, %v448
        %v458 = vsel %vm456, %v455, %v450
        %vm459 = vcmask 23552
        %460 = vst.msk [vmem:[%s247] sm:$0xff] %vm459, %v457
        %vm461 = vcmask 22528
        %462 = vst.msk [vmem:[%s247 + $0x8] sm:$0x7f] %vm461, %v458
      $region40: #{tpu_custom_call.1} parent=27 // pred_fallthru
        _
      %p463 = scmp.lt.s32.totalorder %s17, 1
      %s464 = scalar_select %p463, %s17, 1
      %s465 = smul.addr %s464, 2
      %s466 = smul.addr %s465, 8
      %s467 = scalar_lea.vmem %s2, %s466
      // Predicated region
      $region41: #{tpu_custom_call.1} parent=27 // pred_check
        %p468 = pneg %p111
      $region42: #{tpu_custom_call.1} parent=27 // pred_check_branch
        %470 = sbr.rel (%p468) target = $region44
      $region43: #{tpu_custom_call.1} parent=27 // pred_region
        _
      $region44: #{tpu_custom_call.1} parent=27 // pred_fallthru
        _
    $region28: #{tpu_custom_call.1} parent=5 // pred_fallthru
      _
    %p471 = scmp.le.s32.totalorder 2, %s8
    // Predicated region
    $region45: #{tpu_custom_call.1} parent=5 // pred_check
      %p472 = pneg %p471
    $region46: #{tpu_custom_call.1} parent=5 // pred_check_branch
      %474 = sbr.rel (%p472) target = $region48
    $region47: #{tpu_custom_call.1} parent=5 // pred_region
      %s475 = ssub.s32 %s8, 2
      // Predicated region
      $region49: #{tpu_custom_call.1} parent=47 // pred_check
        %p476 = pneg %p117
      $region50: #{tpu_custom_call.1} parent=47 // pred_check_branch
        %478 = sbr.rel (%p476) target = $region52
      $region51: #{tpu_custom_call.1} parent=47 // pred_region
        %p479 = scmp.lt.s32.totalorder %s19, 1
        %s480 = scalar_select %p479, %s19, 1
        %s481 = smul.addr %s480, 2
        %s482 = smul.addr %s481, 8
        %s483 = scalar_lea.vmem %s2, %s482
      $region52: #{tpu_custom_call.1} parent=47 // pred_fallthru
        _
    $region48: #{tpu_custom_call.1} parent=5 // pred_fallthru
      _
  $region6: #{tpu_custom_call.1} parent=0 // loop_footer
    %s12 = sadd.s32 1, %s8
  $region7: #{tpu_custom_call.1} parent=0 // loop_footer_branch
    %7 = sbr.rel target = $region3
  $region8: #{tpu_custom_call.1} parent=0 // loop_exit
    _

// kernel: tpu_custom_call.1
$region0: #{tpu_custom_call.1}
  #allocation0 [shape = 'u32[]', space=smem, size = 0x4, offset = 0x4, fixed_abs, tag = 'smem constant byte address 0x4 - core index']
  #allocation1 [shape = 'u32[144,128]{1,0:T(1,128)}', space=vmem, size = 0x12000, scoped, tag = 'internal scratch']
  #allocation2 [shape = 'f32[1,15]{1,0:T(1,128)}', space=vmem, size = 0x200, scoped, tag = 'scratch operand']
  #allocation3 [shape = 'f32[1,15]{1,0:T(1,128)}', space=vmem, size = 0x200, scoped, tag = 'scratch operand']
  #allocation4 [shape = 'f32[1,15]{1,0:T(1,128)}', space=vmem, size = 0x200, scoped, tag = 'scratch operand']
  %s0 = inlined_call_operand.vmem [shape: f32[400,10], index: 0, kind: input, shape index: {}]
  %s1 = inlined_call_operand.vmem [shape: s32[400,1], index: 1, kind: input, shape index: {}]
  %s2 = inlined_call_operand.vmem [shape: f32[2,3,15], index: 2, kind: output, shape index: {}]
  %s3 = sld [smem:[#allocation0]]
  $region53: #{tpu_custom_call.1} parent=0
    _
  %s5 = ssub.s32 1, %s3
  %s6 = scalar_select 0, %s5, %s3
  loop: start=0, step=1, limit=6
  $region2: #{tpu_custom_call.1} parent=0 // loop_pre_header
    _
  $region3: #{tpu_custom_call.1} parent=0 // loop_header
    %s8 = sphi 0, %s12
    %p9 = scmp.ge.s32.totalorder %s8, 6
    %s15 = sphi 0, %s27
    %s16 = sphi 0, %s23
    %s17 = sphi 0, %s15
    %s18 = sphi 0, %s16
    %s19 = sphi 0, %s17
    %s20 = sphi 0, %s18
    %s38 = sphi 0, %s40
    %s41 = sphi 0, %s38
    %s42 = sphi 0, %s41
    %s58 = sphi 0, %s42
    %s72 = sphi 0, %s74
    %s75 = sphi 0, %s72
    %s76 = sphi 0, %s75
    %s92 = sphi 0, %s76
    %s98 = sphi 0, %s100
    %s101 = sphi 0, %s98
    %s102 = sphi 0, %s101
    %s118 = sphi 0, %s102
  $region4: #{tpu_custom_call.1} parent=0 // loop_header_branch
    %11 = sbr.rel (%p9) target = $region8
  $region5: #{tpu_custom_call.1} parent=0 // loop_body
    %s13 = ssub.s32 %s8, 1
    %s14 = ssub.s32 %s8, 2
    %s21 = sadd.s32 1, %s16
    %p22 = scmp.ge.s32.totalorder %s21, 2
    %s23 = scalar_select %p22, 0, %s21
    %s24 = sadd.s32 1, %s15
    %s25 = scalar_select %p22, %s24, %s15
    %p26 = scmp.ge.s32.totalorder %s25, 2
    %s27 = scalar_select %p26, 0, %s25
    %s28 = smul.u32 %s15, 2
    %s29 = sadd.s32 %s28, %s16
    %p30 = scmp.lt.s32.totalorder %s29, 3
    %s31 = scalar_select %p30, %s29, 3
    %s32 = smul.u32 %s27, 2
    %s33 = sadd.s32 %s32, %s23
    %p34 = scmp.lt.s32.totalorder %s33, 3
    %s35 = scalar_select %p34, %s33, 3
    %s36 = ssub.s32 %s31, %s35
    %p37 = scmp.eq.s32.totalorder %s36, 0
    %s39 = sadd.s32 %s38, 1
    %s40 = scalar_select %p37, %s38, %s39
    %p43 = pneg %p37
    %p44 = scmp.eq.s32.totalorder %s8, 3
    %p45 = por %p43, %p44
    %p46 = scmp.ne.s32.totalorder %s38, %s41
    %p47 = scmp.eq.s32.totalorder %s8, 0
    %p48 = por %p46, %p47
    %p49 = scmp.ne.s32.totalorder %s38, %s41
    %p50 = scmp.eq.s32.totalorder %s13, 3
    %p51 = por %p49, %p50
    %p52 = scmp.ne.s32.totalorder %s41, %s42
    %p53 = scmp.eq.s32.totalorder %s13, 0
    %p54 = por %p52, %p53
    %p55 = scmp.ne.s32.totalorder %s41, %s42
    %p56 = scmp.eq.s32.totalorder %s14, 3
    %p57 = por %p55, %p56
    %p59 = scmp.ne.s32.totalorder %s42, %s58
    %p60 = scmp.eq.s32.totalorder %s14, 0
    %p61 = por %p59, %p60
    %s62 = smul.u32 %s15, 2
    %s63 = sadd.s32 %s62, %s16
    %p64 = scmp.lt.s32.totalorder %s63, 3
    %s65 = scalar_select %p64, %s63, 3
    %s66 = smul.u32 %s27, 2
    %s67 = sadd.s32 %s66, %s23
    %p68 = scmp.lt.s32.totalorder %s67, 3
    %s69 = scalar_select %p68, %s67, 3
    %s70 = ssub.s32 %s65, %s69
    %p71 = scmp.eq.s32.totalorder %s70, 0
    %s73 = sadd.s32 %s72, 1
    %s74 = scalar_select %p71, %s72, %s73
    %p77 = pneg %p71
    %p78 = scmp.eq.s32.totalorder %s8, 3
    %p79 = por %p77, %p78
    %p80 = scmp.ne.s32.totalorder %s72, %s75
    %p81 = scmp.eq.s32.totalorder %s8, 0
    %p82 = por %p80, %p81
    %p83 = scmp.ne.s32.totalorder %s72, %s75
    %p84 = scmp.eq.s32.totalorder %s13, 3
    %p85 = por %p83, %p84
    %p86 = scmp.ne.s32.totalorder %s75, %s76
    %p87 = scmp.eq.s32.totalorder %s13, 0
    %p88 = por %p86, %p87
    %p89 = scmp.ne.s32.totalorder %s75, %s76
    %p90 = scmp.eq.s32.totalorder %s14, 3
    %p91 = por %p89, %p90
    %p93 = scmp.ne.s32.totalorder %s76, %s92
    %p94 = scmp.eq.s32.totalorder %s14, 0
    %p95 = por %p93, %p94
    %s96 = ssub.s32 %s15, %s27
    %p97 = scmp.eq.s32.totalorder %s96, 0
    %s99 = sadd.s32 %s98, 1
    %s100 = scalar_select %p97, %s98, %s99
    %p103 = pneg %p97
    %p104 = scmp.eq.s32.totalorder %s8, 3
    %p105 = por %p103, %p104
    %p106 = scmp.ne.s32.totalorder %s98, %s101
    %p107 = scmp.eq.s32.totalorder %s8, 0
    %p108 = por %p106, %p107
    %p109 = scmp.ne.s32.totalorder %s98, %s101
    %p110 = scmp.eq.s32.totalorder %s13, 3
    %p111 = por %p109, %p110
    %p112 = scmp.ne.s32.totalorder %s101, %s102
    %p113 = scmp.eq.s32.totalorder %s13, 0
    %p114 = por %p112, %p113
    %p115 = scmp.ne.s32.totalorder %s101, %s102
    %p116 = scmp.eq.s32.totalorder %s14, 3
    %p117 = por %p115, %p116
    %p119 = scmp.ne.s32.totalorder %s102, %s118
    %p120 = scmp.eq.s32.totalorder %s14, 0
    %p121 = por %p119, %p120
    %p122 = scmp.le.s32.totalorder 1, %s8
    %p123 = scmp.lt.s32.totalorder %s8, 5
    %p124 = pnand %p122, %p123
    %p125 = pneg %p124
    // Predicated region
    $region9: #{tpu_custom_call.1} parent=5 // pred_check
      _
    $region10: #{tpu_custom_call.1} parent=5 // pred_check_branch
      %127 = sbr.rel (%p124) target = $region12
    $region11: #{tpu_custom_call.1} parent=5 // pred_region
      %s128 = ssub.s32 %s8, 1
    $region12: #{tpu_custom_call.1} parent=5 // pred_fallthru
      _
    %p129 = scmp.lt.s32.totalorder %s8, 4
    // Predicated region
    $region13: #{tpu_custom_call.1} parent=5 // pred_check
      %p130 = pneg %p129
    $region14: #{tpu_custom_call.1} parent=5 // pred_check_branch
      %132 = sbr.rel (%p130) target = $region16
    $region15: #{tpu_custom_call.1} parent=5 // pred_region
      // Predicated region
      $region17: #{tpu_custom_call.1} parent=15 // pred_check
        %p133 = pneg %p48
      $region18: #{tpu_custom_call.1} parent=15 // pred_check_branch
        %135 = sbr.rel (%p133) target = $region20
      $region19: #{tpu_custom_call.1} parent=15 // pred_region
        %s136 = smul.u32 %s15, 2
        %s137 = sadd.s32 %s136, %s16
        %p138 = scmp.lt.s32.totalorder %s137, 3
        %s139 = scalar_select %p138, %s137, 3
        %s140 = smul.u32 16, %s139
        %s141 = ssub.s32 50, %s140
        %p142 = scmp.lt.s32.totalorder %s141, 16
        %s143 = scalar_select %p142, %s141, 16
        %s144 = smul.u32 128, %s143
        %p145 = scmp.lt.s32.totalorder %s140, 49
        %s146 = scalar_select %p145, %s140, 49
        %s147 = smul.addr %s146, 8
        %s148 = scalar_lea.vmem %s0, %s147
        %s149 = smul.u32 %s15, 2
        %s150 = sadd.s32 %s149, %s16
        %p151 = scmp.lt.s32.totalorder %s150, 3
        %s152 = scalar_select %p151, %s150, 3
        %s153 = smul.u32 16, %s152
        %s154 = ssub.s32 50, %s153
        %p155 = scmp.lt.s32.totalorder %s154, 16
        %s156 = scalar_select %p155, %s154, 16
        %s157 = smul.u32 128, %s156
      $region20: #{tpu_custom_call.1} parent=15 // pred_fallthru
        _
      // Predicated region
      $region21: #{tpu_custom_call.1} parent=15 // pred_check
        %p158 = pneg %p82
      $region22: #{tpu_custom_call.1} parent=15 // pred_check_branch
        %160 = sbr.rel (%p158) target = $region24
      $region23: #{tpu_custom_call.1} parent=15 // pred_region
        %s161 = smul.u32 %s15, 2
        %s162 = sadd.s32 %s161, %s16
        %p163 = scmp.lt.s32.totalorder %s162, 3
        %s164 = scalar_select %p163, %s162, 3
        %s165 = smul.u32 16, %s164
        %s166 = ssub.s32 50, %s165
        %p167 = scmp.lt.s32.totalorder %s166, 16
        %s168 = scalar_select %p167, %s166, 16
        %s169 = smul.u32 128, %s168
        %p170 = scmp.lt.s32.totalorder %s165, 49
        %s171 = scalar_select %p170, %s165, 49
        %s172 = smul.addr %s171, 8
        %s173 = scalar_lea.vmem %s1, %s172
        %s174 = smul.u32 %s15, 2
        %s175 = sadd.s32 %s174, %s16
        %p176 = scmp.lt.s32.totalorder %s175, 3
        %s177 = scalar_select %p176, %s175, 3
        %s178 = smul.u32 16, %s177
        %s179 = ssub.s32 50, %s178
        %p180 = scmp.lt.s32.totalorder %s179, 16
        %s181 = scalar_select %p180, %s179, 16
        %s182 = smul.u32 128, %s181
      $region24: #{tpu_custom_call.1} parent=15 // pred_fallthru
        _
    $region16: #{tpu_custom_call.1} parent=5 // pred_fallthru
      _
    %p183 = scmp.le.s32.totalorder 1, %s8
    %p184 = scmp.lt.s32.totalorder %s8, 5
    %p185 = pnand %p183, %p184
    %p186 = pneg %p185
    // Predicated region
    $region25: #{tpu_custom_call.1} parent=5 // pred_check
      _
    $region26: #{tpu_custom_call.1} parent=5 // pred_check_branch
      %188 = sbr.rel (%p185) target = $region28
    $region27: #{tpu_custom_call.1} parent=5 // pred_region
      %s189 = ssub.s32 %s8, 1
      %s190 = smul.u32 %s17, 2
      %s191 = sadd.s32 %s190, %s18
      %p192 = scmp.lt.s32.totalorder %s191, 3
      %s193 = scalar_select %p192, %s191, 3
      %s194 = smul.u32 16, %s193
      %s195 = ssub.s32 50, %s194
      %p196 = scmp.lt.s32.totalorder %s195, 16
      %s197 = scalar_select %p196, %s195, 16
      %s198 = smul.u32 128, %s197
      %p199 = scmp.lt.s32.totalorder %s194, 49
      %s200 = scalar_select %p199, %s194, 49
      %s201 = smul.addr %s200, 8
      %s202 = scalar_lea.vmem %s0, %s201
      %p203 = pneg %p54
      %p204 = pneg %p51
      %s205 = smul.u32 %s17, 2
      %s206 = sadd.s32 %s205, %s18
      %p207 = scmp.lt.s32.totalorder %s206, 3
      %s208 = scalar_select %p207, %s206, 3
      %s209 = smul.u32 16, %s208
      %s210 = ssub.s32 50, %s209
      %p211 = scmp.lt.s32.totalorder %s210, 16
      %s212 = scalar_select %p211, %s210, 16
      %s213 = smul.u32 128, %s212
      %p214 = scmp.lt.s32.totalorder %s209, 49
      %s215 = scalar_select %p214, %s209, 49
      %s216 = smul.addr %s215, 8
      %s217 = scalar_lea.vmem %s1, %s216
      %p218 = pneg %p88
      %p219 = pneg %p85
      %p220 = pneg %p114
      %p221 = pneg %p111
      %p222 = scmp.lt.s32.totalorder %s17, 1
      %s223 = scalar_select %p222, %s17, 1
      %s224 = smul.addr %s223, 4
      %s225 = scalar_lea.vmem %s2, %s224
      %s226 = smul.u32 %s17, 2
      %s227 = sadd.s32 %s226, %s18
      %p228 = scmp.lt.s32.totalorder %s227, 3
      %s229 = scalar_select %p228, %s227, 3
      %s230 = smul.u32 16, %s229
      %s231 = ssub.s32 50, %s230
      %p232 = scmp.lt.s32.totalorder %s231, 16
      %s233 = scalar_select %p232, %s231, 16
      %s234 = smul.u32 128, %s233
      %p235 = scmp.lt.s32.totalorder %s230, 49
      %s236 = scalar_select %p235, %s230, 49
      %s237 = smul.addr %s236, 8
      %s238 = scalar_lea.vmem %s0, %s237
      %s239 = smul.u32 %s17, 2
      %s240 = sadd.s32 %s239, %s18
      %p241 = scmp.lt.s32.totalorder %s240, 3
      %s242 = scalar_select %p241, %s240, 3
      %s243 = smul.u32 16, %s242
      %s244 = ssub.s32 50, %s243
      %p245 = scmp.lt.s32.totalorder %s244, 16
      %s246 = scalar_select %p245, %s244, 16
      %s247 = smul.u32 128, %s246
      %s248 = smul.u32 %s17, 2
      %s249 = sadd.s32 %s248, %s18
      %p250 = scmp.lt.s32.totalorder %s249, 3
      %s251 = scalar_select %p250, %s249, 3
      %s252 = smul.u32 16, %s251
      %s253 = ssub.s32 50, %s252
      %p254 = scmp.lt.s32.totalorder %s253, 16
      %s255 = scalar_select %p254, %s253, 16
      %s256 = smul.u32 128, %s255
      %p257 = scmp.lt.s32.totalorder %s252, 49
      %s258 = scalar_select %p257, %s252, 49
      %s259 = smul.addr %s258, 8
      %s260 = scalar_lea.vmem %s1, %s259
      %s261 = smul.u32 %s17, 2
      %s262 = sadd.s32 %s261, %s18
      %p263 = scmp.lt.s32.totalorder %s262, 3
      %s264 = scalar_select %p263, %s262, 3
      %s265 = smul.u32 16, %s264
      %s266 = ssub.s32 50, %s265
      %p267 = scmp.lt.s32.totalorder %s266, 16
      %s268 = scalar_select %p267, %s266, 16
      %s269 = smul.u32 128, %s268
      %p270 = scmp.lt.s32.totalorder %s17, 1
      %s271 = scalar_select %p270, %s17, 1
      %s272 = smul.addr %s271, 4
      %s273 = scalar_lea.vmem %s2, %s272
      %p274 = scmp.eq.s32.totalorder %s18, 0
      // Predicated region
      $region29: #{tpu_custom_call.1} parent=27 // pred_check
        %p275 = pneg %p274
      $region30: #{tpu_custom_call.1} parent=27 // pred_check_branch
        %277 = sbr.rel (%p275) target = $region32
      $region31: #{tpu_custom_call.1} parent=27 // pred_region
        %vm278 = vcmask 114688
        %279 = vst.msk [vmem:[#allocation2] sm:$0x1] %vm278, 0.0
        %280 = vst.msk [vmem:[#allocation3] sm:$0x1] %vm278, 0.0
        %281 = vst.msk [vmem:[#allocation4] sm:$0x1] %vm278, 0.0
      $region32: #{tpu_custom_call.1} parent=27 // pred_fallthru
        _
      %s282 = smul.u32 %s17, 2
      %s283 = sadd.s32 %s282, %s18
      %s284 = smul.u32 %s283, 128
      %p285 = scmp.lt.s32.totalorder %s284, 400
      // Predicated region
      $region33: #{tpu_custom_call.1} parent=27 // pred_check
        %p286 = pneg %p285
      $region34: #{tpu_custom_call.1} parent=27 // pred_check_branch
        %288 = sbr.rel (%p286) target = $region36
      $region35: #{tpu_custom_call.1} parent=27 // pred_region
        %v289 = vld [vmem:[%s238] sm:$0xff]
        %v290 = vld [vmem:[%s238 + $0x8] sm:$0xff]
        %v291 = vld [vmem:[%s238 + $0x10] sm:$0xff]
        %v292 = vld [vmem:[%s238 + $0x18] sm:$0xff]
        %v293 = vld [vmem:[%s238 + $0x20] sm:$0xff]
        %v294 = vld [vmem:[%s238 + $0x28] sm:$0xff]
        %v295 = vld [vmem:[%s238 + $0x30] sm:$0xff]
        %v296 = vld [vmem:[%s238 + $0x38] sm:$0xff]
        %v297 = vld [vmem:[%s238 + $0x40] sm:$0xff]
        %v298 = vld [vmem:[%s238 + $0x48] sm:$0xff]
        %v299 = vld [vmem:[%s238 + $0x50] sm:$0xff]
        %v300 = vld [vmem:[%s238 + $0x58] sm:$0xff]
        %v301 = vld [vmem:[%s238 + $0x60] sm:$0xff]
        %v302 = vld [vmem:[%s238 + $0x68] sm:$0xff]
        %v303 = vld [vmem:[%s238 + $0x70] sm:$0xff]
        %v304 = vld [vmem:[%s238 + $0x78] sm:$0xff]
        %vm305 = vcmask 80896
        %v306 = vsel %vm305, %v289, -inf
        %307 = vmax.xlane.f32.xlu0 %v306
        %v308 = vpop.xlane.xlu0 %307
        %v309 = vsel %vm305, %v290, -inf
        %310 = vmax.xlane.f32.xlu0 %v309
        %v311 = vpop.xlane.xlu0 %310
        %v312 = vsel %vm305, %v291, -inf
        %313 = vmax.xlane.f32.xlu0 %v312
        %v314 = vpop.xlane.xlu0 %313
        %v315 = vsel %vm305, %v292, -inf
        %316 = vmax.xlane.f32.xlu0 %v315
        %v317 = vpop.xlane.xlu0 %316
        %v318 = vsel %vm305, %v293, -inf
        %319 = vmax.xlane.f32.xlu0 %v318
        %v320 = vpop.xlane.xlu0 %319
        %v321 = vsel %vm305, %v294, -inf
        %322 = vmax.xlane.f32.xlu0 %v321
        %v323 = vpop.xlane.xlu0 %322
        %v324 = vsel %vm305, %v295, -inf
        %325 = vmax.xlane.f32.xlu0 %v324
        %v326 = vpop.xlane.xlu0 %325
        %v327 = vsel %vm305, %v296, -inf
        %328 = vmax.xlane.f32.xlu0 %v327
        %v329 = vpop.xlane.xlu0 %328
        %v330 = vsel %vm305, %v297, -inf
        %331 = vmax.xlane.f32.xlu0 %v330
        %v332 = vpop.xlane.xlu0 %331
        %v333 = vsel %vm305, %v298, -inf
        %334 = vmax.xlane.f32.xlu0 %v333
        %v335 = vpop.xlane.xlu0 %334
        %v336 = vsel %vm305, %v299, -inf
        %337 = vmax.xlane.f32.xlu0 %v336
        %v338 = vpop.xlane.xlu0 %337
        %v339 = vsel %vm305, %v300, -inf
        %340 = vmax.xlane.f32.xlu0 %v339
        %v341 = vpop.xlane.xlu0 %340
        %v342 = vsel %vm305, %v301, -inf
        %343 = vmax.xlane.f32.xlu0 %v342
        %v344 = vpop.xlane.xlu0 %343
        %v345 = vsel %vm305, %v302, -inf
        %346 = vmax.xlane.f32.xlu0 %v345
        %v347 = vpop.xlane.xlu0 %346
        %v348 = vsel %vm305, %v303, -inf
        %349 = vmax.xlane.f32.xlu0 %v348
        %v350 = vpop.xlane.xlu0 %349
        %v351 = vsel %vm305, %v304, -inf
        %352 = vmax.xlane.f32.xlu0 %v351
        %v353 = vpop.xlane.xlu0 %352
        %v354 = vsub.f32 %v289, %v308
        %v355 = vsub.f32 %v290, %v311
        %v356 = vsub.f32 %v291, %v314
        %v357 = vsub.f32 %v292, %v317
        %v358 = vsub.f32 %v293, %v320
        %v359 = vsub.f32 %v294, %v323
        %v360 = vsub.f32 %v295, %v326
        %v361 = vsub.f32 %v296, %v329
        %v362 = vsub.f32 %v297, %v332
        %v363 = vsub.f32 %v298, %v335
        %v364 = vsub.f32 %v299, %v338
        %v365 = vsub.f32 %v300, %v341
        %v366 = vsub.f32 %v301, %v344
        %v367 = vsub.f32 %v302, %v347
        %v368 = vsub.f32 %v303, %v350
        %v369 = vsub.f32 %v304, %v353
        %v370 = vmul.f32 %v354, 1.442695
        %v371 = vpow.pop %v370
        %v372 = vmul.f32 %v355, 1.442695
        %v373 = vpow.pop %v372
        %v374 = vmul.f32 %v356, 1.442695
        %v375 = vpow.pop %v374
        %v376 = vmul.f32 %v357, 1.442695
        %v377 = vpow.pop %v376
        %v378 = vmul.f32 %v358, 1.442695
        %v379 = vpow.pop %v378
        %v380 = vmul.f32 %v359, 1.442695
        %v381 = vpow.pop %v380
        %v382 = vmul.f32 %v360, 1.442695
        %v383 = vpow.pop %v382
        %v384 = vmul.f32 %v361, 1.442695
        %v385 = vpow.pop %v384
        %v386 = vmul.f32 %v362, 1.442695
        %v387 = vpow.pop %v386
        %v388 = vmul.f32 %v363, 1.442695
        %v389 = vpow.pop %v388
        %v390 = vmul.f32 %v364, 1.442695
        %v391 = vpow.pop %v390
        %v392 = vmul.f32 %v365, 1.442695
        %v393 = vpow.pop %v392
        %v394 = vmul.f32 %v366, 1.442695
        %v395 = vpow.pop %v394
        %v396 = vmul.f32 %v367, 1.442695
        %v397 = vpow.pop %v396
        %v398 = vmul.f32 %v368, 1.442695
        %v399 = vpow.pop %v398
        %v400 = vmul.f32 %v369, 1.442695
        %v401 = vpow.pop %v400
        %v402 = vsel %vm305, %v371, 0.0
        %403 = vadd.xlane.f32.xlu0 %v402
        %v404 = vpop.xlane.xlu0 %403
        %v405 = vsel %vm305, %v373, 0.0
        %406 = vadd.xlane.f32.xlu0 %v405
        %v407 = vpop.xlane.xlu0 %406
        %v408 = vsel %vm305, %v375, 0.0
        %409 = vadd.xlane.f32.xlu0 %v408
        %v410 = vpop.xlane.xlu0 %409
        %v411 = vsel %vm305, %v377, 0.0
        %412 = vadd.xlane.f32.xlu0 %v411
        %v413 = vpop.xlane.xlu0 %412
        %v414 = vsel %vm305, %v379, 0.0
        %415 = vadd.xlane.f32.xlu0 %v414
        %v416 = vpop.xlane.xlu0 %415
        %v417 = vsel %vm305, %v381, 0.0
        %418 = vadd.xlane.f32.xlu0 %v417
        %v419 = vpop.xlane.xlu0 %418
        %v420 = vsel %vm305, %v383, 0.0
        %421 = vadd.xlane.f32.xlu0 %v420
        %v422 = vpop.xlane.xlu0 %421
        %v423 = vsel %vm305, %v385, 0.0
        %424 = vadd.xlane.f32.xlu0 %v423
        %v425 = vpop.xlane.xlu0 %424
        %v426 = vsel %vm305, %v387, 0.0
        %427 = vadd.xlane.f32.xlu0 %v426
        %v428 = vpop.xlane.xlu0 %427
        %v429 = vsel %vm305, %v389, 0.0
        %430 = vadd.xlane.f32.xlu0 %v429
        %v431 = vpop.xlane.xlu0 %430
        %v432 = vsel %vm305, %v391, 0.0
        %433 = vadd.xlane.f32.xlu0 %v432
        %v434 = vpop.xlane.xlu0 %433
        %v435 = vsel %vm305, %v393, 0.0
        %436 = vadd.xlane.f32.xlu0 %v435
        %v437 = vpop.xlane.xlu0 %436
        %v438 = vsel %vm305, %v395, 0.0
        %439 = vadd.xlane.f32.xlu0 %v438
        %v440 = vpop.xlane.xlu0 %439
        %v441 = vsel %vm305, %v397, 0.0
        %442 = vadd.xlane.f32.xlu0 %v441
        %v443 = vpop.xlane.xlu0 %442
        %v444 = vsel %vm305, %v399, 0.0
        %445 = vadd.xlane.f32.xlu0 %v444
        %v446 = vpop.xlane.xlu0 %445
        %v447 = vsel %vm305, %v401, 0.0
        %448 = vadd.xlane.f32.xlu0 %v447
        %v449 = vpop.xlane.xlu0 %448
        %v450 = vrcp.pop %v404
        %v451 = vrcp.pop %v407
        %v452 = vrcp.pop %v410
        %v453 = vrcp.pop %v413
        %v454 = vrcp.pop %v416
        %v455 = vrcp.pop %v419
        %v456 = vrcp.pop %v422
        %v457 = vrcp.pop %v425
        %v458 = vrcp.pop %v428
        %v459 = vrcp.pop %v431
        %v460 = vrcp.pop %v434
        %v461 = vrcp.pop %v437
        %v462 = vrcp.pop %v440
        %v463 = vrcp.pop %v443
        %v464 = vrcp.pop %v446
        %v465 = vrcp.pop %v449
        %v466 = vlaneseq
        %v467 = vand.u32 %v466, 127
        %vm468 = vcmp.eq.f32.partialorder %v289, %v308
        %vm469 = vcmp.eq.f32.partialorder %v290, %v311
        %vm470 = vcmp.eq.f32.partialorder %v291, %v314
        %vm471 = vcmp.eq.f32.partialorder %v292, %v317
        %vm472 = vcmp.eq.f32.partialorder %v293, %v320
        %vm473 = vcmp.eq.f32.partialorder %v294, %v323
        %vm474 = vcmp.eq.f32.partialorder %v295, %v326
        %vm475 = vcmp.eq.f32.partialorder %v296, %v329
        %vm476 = vcmp.eq.f32.partialorder %v297, %v332
        %vm477 = vcmp.eq.f32.partialorder %v298, %v335
        %vm478 = vcmp.eq.f32.partialorder %v299, %v338
        %vm479 = vcmp.eq.f32.partialorder %v300, %v341
        %vm480 = vcmp.eq.f32.partialorder %v301, %v344
        %vm481 = vcmp.eq.f32.partialorder %v302, %v347
        %vm482 = vcmp.eq.f32.partialorder %v303, %v350
        %vm483 = vcmp.eq.f32.partialorder %v304, %v353
        %v484 = vsel %vm468, %v467, 10
        %v485 = vsel %vm469, %v467, 10
        %v486 = vsel %vm470, %v467, 10
        %v487 = vsel %vm471, %v467, 10
        %v488 = vsel %vm472, %v467, 10
        %v489 = vsel %vm473, %v467, 10
        %v490 = vsel %vm474, %v467, 10
        %v491 = vsel %vm475, %v467, 10
        %v492 = vsel %vm476, %v467, 10
        %v493 = vsel %vm477, %v467, 10
        %v494 = vsel %vm478, %v467, 10
        %v495 = vsel %vm479, %v467, 10
        %v496 = vsel %vm480, %v467, 10
        %v497 = vsel %vm481, %v467, 10
        %v498 = vsel %vm482, %v467, 10
        %v499 = vsel %vm483, %v467, 10
        %v500 = vsel %vm305, %v484, 2147483647
        %v501 = vand.u32 %v500, 65535
        %v502 = vshra.s32 %v500, 16
        %v503 = vcvt.s32.f32 %v501
        %v504 = vcvt.s32.f32 %v502
        %505 = vmin.xlane.f32.xlu0 %v504
        %v506 = vpop.xlane.xlu0 %505
        %vm507 = vcmp.eq.f32.partialorder %v504, %v506
        %v508 = vsel %vm507, %v503, inf
        %509 = vmin.xlane.f32.xlu0 %v508
        %v510 = vpop.xlane.xlu0 %509
        %v511 = vcvt.f32.s32 %v510
        %v512 = vcvt.f32.s32 %v506
        %v513 = vshll.u32 %v512, 16
        %v514 = vadd.s32 %v513, %v511
        %v515 = vsel %vm305, %v485, 2147483647
        %v516 = vand.u32 %v515, 65535
        %v517 = vshra.s32 %v515, 16
        %v518 = vcvt.s32.f32 %v516
        %v519 = vcvt.s32.f32 %v517
        %520 = vmin.xlane.f32.xlu0 %v519
        %v521 = vpop.xlane.xlu0 %520
        %vm522 = vcmp.eq.f32.partialorder %v519, %v521
        %v523 = vsel %vm522, %v518, inf
        %524 = vmin.xlane.f32.xlu0 %v523
        %v525 = vpop.xlane.xlu0 %524
        %v526 = vcvt.f32.s32 %v525
        %v527 = vcvt.f32.s32 %v521
        %v528 = vshll.u32 %v527, 16
        %v529 = vadd.s32 %v528, %v526
        %v530 = vsel %vm305, %v486, 2147483647
        %v531 = vand.u32 %v530, 65535
        %v532 = vshra.s32 %v530, 16
        %v533 = vcvt.s32.f32 %v531
        %v534 = vcvt.s32.f32 %v532
        %535 = vmin.xlane.f32.xlu0 %v534
        %v536 = vpop.xlane.xlu0 %535
        %vm537 = vcmp.eq.f32.partialorder %v534, %v536
        %v538 = vsel %vm537, %v533, inf
        %539 = vmin.xlane.f32.xlu0 %v538
        %v540 = vpop.xlane.xlu0 %539
        %v541 = vcvt.f32.s32 %v540
        %v542 = vcvt.f32.s32 %v536
        %v543 = vshll.u32 %v542, 16
        %v544 = vadd.s32 %v543, %v541
        %v545 = vsel %vm305, %v487, 2147483647
        %v546 = vand.u32 %v545, 65535
        %v547 = vshra.s32 %v545, 16
        %v548 = vcvt.s32.f32 %v546
        %v549 = vcvt.s32.f32 %v547
        %550 = vmin.xlane.f32.xlu0 %v549
        %v551 = vpop.xlane.xlu0 %550
        %vm552 = vcmp.eq.f32.partialorder %v549, %v551
        %v553 = vsel %vm552, %v548, inf
        %554 = vmin.xlane.f32.xlu0 %v553
        %v555 = vpop.xlane.xlu0 %554
        %v556 = vcvt.f32.s32 %v555
        %v557 = vcvt.f32.s32 %v551
        %v558 = vshll.u32 %v557, 16
        %v559 = vadd.s32 %v558, %v556
        %v560 = vsel %vm305, %v488, 2147483647
        %v561 = vand.u32 %v560, 65535
        %v562 = vshra.s32 %v560, 16
        %v563 = vcvt.s32.f32 %v561
        %v564 = vcvt.s32.f32 %v562
        %565 = vmin.xlane.f32.xlu0 %v564
        %v566 = vpop.xlane.xlu0 %565
        %vm567 = vcmp.eq.f32.partialorder %v564, %v566
        %v568 = vsel %vm567, %v563, inf
        %569 = vmin.xlane.f32.xlu0 %v568
        %v570 = vpop.xlane.xlu0 %569
        %v571 = vcvt.f32.s32 %v570
        %v572 = vcvt.f32.s32 %v566
        %v573 = vshll.u32 %v572, 16
        %v574 = vadd.s32 %v573, %v571
        %v575 = vsel %vm305, %v489, 2147483647
        %v576 = vand.u32 %v575, 65535
        %v577 = vshra.s32 %v575, 16
        %v578 = vcvt.s32.f32 %v576
        %v579 = vcvt.s32.f32 %v577
        %580 = vmin.xlane.f32.xlu0 %v579
        %v581 = vpop.xlane.xlu0 %580
        %vm582 = vcmp.eq.f32.partialorder %v579, %v581
        %v583 = vsel %vm582, %v578, inf
        %584 = vmin.xlane.f32.xlu0 %v583
        %v585 = vpop.xlane.xlu0 %584
        %v586 = vcvt.f32.s32 %v585
        %v587 = vcvt.f32.s32 %v581
        %v588 = vshll.u32 %v587, 16
        %v589 = vadd.s32 %v588, %v586
        %v590 = vsel %vm305, %v490, 2147483647
        %v591 = vand.u32 %v590, 65535
        %v592 = vshra.s32 %v590, 16
        %v593 = vcvt.s32.f32 %v591
        %v594 = vcvt.s32.f32 %v592
        %595 = vmin.xlane.f32.xlu0 %v594
        %v596 = vpop.xlane.xlu0 %595
        %vm597 = vcmp.eq.f32.partialorder %v594, %v596
        %v598 = vsel %vm597, %v593, inf
        %599 = vmin.xlane.f32.xlu0 %v598
        %v600 = vpop.xlane.xlu0 %599
        %v601 = vcvt.f32.s32 %v600
        %v602 = vcvt.f32.s32 %v596
        %v603 = vshll.u32 %v602, 16
        %v604 = vadd.s32 %v603, %v601
        %v605 = vsel %vm305, %v491, 2147483647
        %v606 = vand.u32 %v605, 65535
        %v607 = vshra.s32 %v605, 16
        %v608 = vcvt.s32.f32 %v606
        %v609 = vcvt.s32.f32 %v607
        %610 = vmin.xlane.f32.xlu0 %v609
        %v611 = vpop.xlane.xlu0 %610
        %vm612 = vcmp.eq.f32.partialorder %v609, %v611
        %v613 = vsel %vm612, %v608, inf
        %614 = vmin.xlane.f32.xlu0 %v613
        %v615 = vpop.xlane.xlu0 %614
        %v616 = vcvt.f32.s32 %v615
        %v617 = vcvt.f32.s32 %v611
        %v618 = vshll.u32 %v617, 16
        %v619 = vadd.s32 %v618, %v616
        %v620 = vsel %vm305, %v492, 2147483647
        %v621 = vand.u32 %v620, 65535
        %v622 = vshra.s32 %v620, 16
        %v623 = vcvt.s32.f32 %v621
        %v624 = vcvt.s32.f32 %v622
        %625 = vmin.xlane.f32.xlu0 %v624
        %v626 = vpop.xlane.xlu0 %625
        %vm627 = vcmp.eq.f32.partialorder %v624, %v626
        %v628 = vsel %vm627, %v623, inf
        %629 = vmin.xlane.f32.xlu0 %v628
        %v630 = vpop.xlane.xlu0 %629
        %v631 = vcvt.f32.s32 %v630
        %v632 = vcvt.f32.s32 %v626
        %v633 = vshll.u32 %v632, 16
        %v634 = vadd.s32 %v633, %v631
        %v635 = vsel %vm305, %v493, 2147483647
        %v636 = vand.u32 %v635, 65535
        %v637 = vshra.s32 %v635, 16
        %v638 = vcvt.s32.f32 %v636
        %v639 = vcvt.s32.f32 %v637
        %640 = vmin.xlane.f32.xlu0 %v639
        %v641 = vpop.xlane.xlu0 %640
        %vm642 = vcmp.eq.f32.partialorder %v639, %v641
        %v643 = vsel %vm642, %v638, inf
        %644 = vmin.xlane.f32.xlu0 %v643
        %v645 = vpop.xlane.xlu0 %644
        %v646 = vcvt.f32.s32 %v645
        %v647 = vcvt.f32.s32 %v641
        %v648 = vshll.u32 %v647, 16
        %v649 = vadd.s32 %v648, %v646
        %v650 = vsel %vm305, %v494, 2147483647
        %v651 = vand.u32 %v650, 65535
        %v652 = vshra.s32 %v650, 16
        %v653 = vcvt.s32.f32 %v651
        %v654 = vcvt.s32.f32 %v652
        %655 = vmin.xlane.f32.xlu0 %v654
        %v656 = vpop.xlane.xlu0 %655
        %vm657 = vcmp.eq.f32.partialorder %v654, %v656
        %v658 = vsel %vm657, %v653, inf
        %659 = vmin.xlane.f32.xlu0 %v658
        %v660 = vpop.xlane.xlu0 %659
        %v661 = vcvt.f32.s32 %v660
        %v662 = vcvt.f32.s32 %v656
        %v663 = vshll.u32 %v662, 16
        %v664 = vadd.s32 %v663, %v661
        %v665 = vsel %vm305, %v495, 2147483647
        %v666 = vand.u32 %v665, 65535
        %v667 = vshra.s32 %v665, 16
        %v668 = vcvt.s32.f32 %v666
        %v669 = vcvt.s32.f32 %v667
        %670 = vmin.xlane.f32.xlu0 %v669
        %v671 = vpop.xlane.xlu0 %670
        %vm672 = vcmp.eq.f32.partialorder %v669, %v671
        %v673 = vsel %vm672, %v668, inf
        %674 = vmin.xlane.f32.xlu0 %v673
        %v675 = vpop.xlane.xlu0 %674
        %v676 = vcvt.f32.s32 %v675
        %v677 = vcvt.f32.s32 %v671
        %v678 = vshll.u32 %v677, 16
        %v679 = vadd.s32 %v678, %v676
        %v680 = vsel %vm305, %v496, 2147483647
        %v681 = vand.u32 %v680, 65535
        %v682 = vshra.s32 %v680, 16
        %v683 = vcvt.s32.f32 %v681
        %v684 = vcvt.s32.f32 %v682
        %685 = vmin.xlane.f32.xlu0 %v684
        %v686 = vpop.xlane.xlu0 %685
        %vm687 = vcmp.eq.f32.partialorder %v684, %v686
        %v688 = vsel %vm687, %v683, inf
        %689 = vmin.xlane.f32.xlu0 %v688
        %v690 = vpop.xlane.xlu0 %689
        %v691 = vcvt.f32.s32 %v690
        %v692 = vcvt.f32.s32 %v686
        %v693 = vshll.u32 %v692, 16
        %v694 = vadd.s32 %v693, %v691
        %v695 = vsel %vm305, %v497, 2147483647
        %v696 = vand.u32 %v695, 65535
        %v697 = vshra.s32 %v695, 16
        %v698 = vcvt.s32.f32 %v696
        %v699 = vcvt.s32.f32 %v697
        %700 = vmin.xlane.f32.xlu0 %v699
        %v701 = vpop.xlane.xlu0 %700
        %vm702 = vcmp.eq.f32.partialorder %v699, %v701
        %v703 = vsel %vm702, %v698, inf
        %704 = vmin.xlane.f32.xlu0 %v703
        %v705 = vpop.xlane.xlu0 %704
        %v706 = vcvt.f32.s32 %v705
        %v707 = vcvt.f32.s32 %v701
        %v708 = vshll.u32 %v707, 16
        %v709 = vadd.s32 %v708, %v706
        %v710 = vsel %vm305, %v498, 2147483647
        %v711 = vand.u32 %v710, 65535
        %v712 = vshra.s32 %v710, 16
        %v713 = vcvt.s32.f32 %v711
        %v714 = vcvt.s32.f32 %v712
        %715 = vmin.xlane.f32.xlu0 %v714
        %v716 = vpop.xlane.xlu0 %715
        %vm717 = vcmp.eq.f32.partialorder %v714, %v716
        %v718 = vsel %vm717, %v713, inf
        %719 = vmin.xlane.f32.xlu0 %v718
        %v720 = vpop.xlane.xlu0 %719
        %v721 = vcvt.f32.s32 %v720
        %v722 = vcvt.f32.s32 %v716
        %v723 = vshll.u32 %v722, 16
        %v724 = vadd.s32 %v723, %v721
        %v725 = vsel %vm305, %v499, 2147483647
        %v726 = vand.u32 %v725, 65535
        %v727 = vshra.s32 %v725, 16
        %v728 = vcvt.s32.f32 %v726
        %v729 = vcvt.s32.f32 %v727
        %730 = vmin.xlane.f32.xlu0 %v729
        %v731 = vpop.xlane.xlu0 %730
        %vm732 = vcmp.eq.f32.partialorder %v729, %v731
        %v733 = vsel %vm732, %v728, inf
        %734 = vmin.xlane.f32.xlu0 %v733
        %v735 = vpop.xlane.xlu0 %734
        %v736 = vcvt.f32.s32 %v735
        %v737 = vcvt.f32.s32 %v731
        %v738 = vshll.u32 %v737, 16
        %v739 = vadd.s32 %v738, %v736
        %v740 = vld [vmem:[%s260] sm:$0xff]
        %v741 = vld [vmem:[%s260 + $0x8] sm:$0xff]
        %v742 = vld [vmem:[%s260 + $0x10] sm:$0xff]
        %v743 = vld [vmem:[%s260 + $0x18] sm:$0xff]
        %v744 = vld [vmem:[%s260 + $0x20] sm:$0xff]
        %v745 = vld [vmem:[%s260 + $0x28] sm:$0xff]
        %v746 = vld [vmem:[%s260 + $0x30] sm:$0xff]
        %v747 = vld [vmem:[%s260 + $0x38] sm:$0xff]
        %v748 = vld [vmem:[%s260 + $0x40] sm:$0xff]
        %v749 = vld [vmem:[%s260 + $0x48] sm:$0xff]
        %v750 = vld [vmem:[%s260 + $0x50] sm:$0xff]
        %v751 = vld [vmem:[%s260 + $0x58] sm:$0xff]
        %v752 = vld [vmem:[%s260 + $0x60] sm:$0xff]
        %v753 = vld [vmem:[%s260 + $0x68] sm:$0xff]
        %v754 = vld [vmem:[%s260 + $0x70] sm:$0xff]
        %v755 = vld [vmem:[%s260 + $0x78] sm:$0xff]
        %vm756 = vcmp.eq.s32.totalorder %v514, %v740
        %vm757 = vcmp.eq.s32.totalorder %v529, %v741
        %vm758 = vcmp.eq.s32.totalorder %v544, %v742
        %vm759 = vcmp.eq.s32.totalorder %v559, %v743
        %vm760 = vcmp.eq.s32.totalorder %v574, %v744
        %vm761 = vcmp.eq.s32.totalorder %v589, %v745
        %vm762 = vcmp.eq.s32.totalorder %v604, %v746
        %vm763 = vcmp.eq.s32.totalorder %v619, %v747
        %vm764 = vcmp.eq.s32.totalorder %v634, %v748
        %vm765 = vcmp.eq.s32.totalorder %v649, %v749
        %vm766 = vcmp.eq.s32.totalorder %v664, %v750
        %vm767 = vcmp.eq.s32.totalorder %v679, %v751
        %vm768 = vcmp.eq.s32.totalorder %v694, %v752
        %vm769 = vcmp.eq.s32.totalorder %v709, %v753
        %vm770 = vcmp.eq.s32.totalorder %v724, %v754
        %vm771 = vcmp.eq.s32.totalorder %v739, %v755
        %v772 = vsel %vm756, 1, 0
        %v773 = vsel %vm757, 1, 0
        %v774 = vsel %vm758, 1, 0
        %v775 = vsel %vm759, 1, 0
        %v776 = vsel %vm760, 1, 0
        %v777 = vsel %vm761, 1, 0
        %v778 = vsel %vm762, 1, 0
        %v779 = vsel %vm763, 1, 0
        %v780 = vsel %vm764, 1, 0
        %v781 = vsel %vm765, 1, 0
        %v782 = vsel %vm766, 1, 0
        %v783 = vsel %vm767, 1, 0
        %v784 = vsel %vm768, 1, 0
        %v785 = vsel %vm769, 1, 0
        %v786 = vsel %vm770, 1, 0
        %v787 = vsel %vm771, 1, 0
        %v788 = vcvt.s32.f32 %v772
        %v789 = vcvt.s32.f32 %v773
        %v790 = vcvt.s32.f32 %v774
        %v791 = vcvt.s32.f32 %v775
        %v792 = vcvt.s32.f32 %v776
        %v793 = vcvt.s32.f32 %v777
        %v794 = vcvt.s32.f32 %v778
        %v795 = vcvt.s32.f32 %v779
        %v796 = vcvt.s32.f32 %v780
        %v797 = vcvt.s32.f32 %v781
        %v798 = vcvt.s32.f32 %v782
        %v799 = vcvt.s32.f32 %v783
        %v800 = vcvt.s32.f32 %v784
        %v801 = vcvt.s32.f32 %v785
        %v802 = vcvt.s32.f32 %v786
        %v803 = vcvt.s32.f32 %v787
        %v804 = vlaneseq
        %v805 = vshrl.u32 %v804, 7
        %v806 = vadd.s32 %v805, 8
        %v807 = vadd.s32 %v805, 16
        %v808 = vadd.s32 %v805, 24
        %v809 = vadd.s32 %v805, 32
        %v810 = vadd.s32 %v805, 40
        %v811 = vadd.s32 %v805, 48
        %v812 = vadd.s32 %v805, 56
        %v813 = vadd.s32 %v805, 64
        %v814 = vadd.s32 %v805, 72
        %v815 = vadd.s32 %v805, 80
        %v816 = vadd.s32 %v805, 88
        %v817 = vadd.s32 %v805, 96
        %v818 = vadd.s32 %v805, 104
        %v819 = vadd.s32 %v805, 112
        %v820 = vadd.s32 %v805, 120
        %v821 = vstv %s284
        %v822 = vadd.s32 %v821, %v805
        %v823 = vadd.s32 %v821, %v806
        %v824 = vadd.s32 %v821, %v807
        %v825 = vadd.s32 %v821, %v808
        %v826 = vadd.s32 %v821, %v809
        %v827 = vadd.s32 %v821, %v810
        %v828 = vadd.s32 %v821, %v811
        %v829 = vadd.s32 %v821, %v812
        %v830 = vadd.s32 %v821, %v813
        %v831 = vadd.s32 %v821, %v814
        %v832 = vadd.s32 %v821, %v815
        %v833 = vadd.s32 %v821, %v816
        %v834 = vadd.s32 %v821, %v817
        %v835 = vadd.s32 %v821, %v818
        %v836 = vadd.s32 %v821, %v819
        %v837 = vadd.s32 %v821, %v820
        %vm838 = vcmp.lt.s32.totalorder %v822, 400
        %vm839 = vcmp.lt.s32.totalorder %v823, 400
        %vm840 = vcmp.lt.s32.totalorder %v824, 400
        %vm841 = vcmp.lt.s32.totalorder %v825, 400
        %vm842 = vcmp.lt.s32.totalorder %v826, 400
        %vm843 = vcmp.lt.s32.totalorder %v827, 400
        %vm844 = vcmp.lt.s32.totalorder %v828, 400
        %vm845 = vcmp.lt.s32.totalorder %v829, 400
        %vm846 = vcmp.lt.s32.totalorder %v830, 400
        %vm847 = vcmp.lt.s32.totalorder %v831, 400
        %vm848 = vcmp.lt.s32.totalorder %v832, 400
        %vm849 = vcmp.lt.s32.totalorder %v833, 400
        %vm850 = vcmp.lt.s32.totalorder %v834, 400
        %vm851 = vcmp.lt.s32.totalorder %v835, 400
        %vm852 = vcmp.lt.s32.totalorder %v836, 400
        %vm853 = vcmp.lt.s32.totalorder %v837, 400
        %v854 = vsel %vm838, %v450, 0.0
        %v855 = vsel %vm839, %v451, 0.0
        %v856 = vsel %vm840, %v452, 0.0
        %v857 = vsel %vm841, %v453, 0.0
        %v858 = vsel %vm842, %v454, 0.0
        %v859 = vsel %vm843, %v455, 0.0
        %v860 = vsel %vm844, %v456, 0.0
        %v861 = vsel %vm845, %v457, 0.0
        %v862 = vsel %vm846, %v458, 0.0
        %v863 = vsel %vm847, %v459, 0.0
        %v864 = vsel %vm848, %v460, 0.0
        %v865 = vsel %vm849, %v461, 0.0
        %v866 = vsel %vm850, %v462, 0.0
        %v867 = vsel %vm851, %v463, 0.0
        %v868 = vsel %vm852, %v464, 0.0
        %v869 = vsel %vm853, %v465, 0.0
        %v870 = vcvt.s32.f32 %v467
        %v871 = vmul.f32 %v870, 0.06666667
        %v872 = vadd.f32 %v870, 1.0
        %v873 = vmul.f32 %v872, 0.06666667
        %vm874 = vcmp.gt.f32.partialorder %v854, %v871
        %vm875 = vcmp.gt.f32.partialorder %v855, %v871
        %vm876 = vcmp.gt.f32.partialorder %v856, %v871
        %vm877 = vcmp.gt.f32.partialorder %v857, %v871
        %vm878 = vcmp.gt.f32.partialorder %v858, %v871
        %vm879 = vcmp.gt.f32.partialorder %v859, %v871
        %vm880 = vcmp.gt.f32.partialorder %v860, %v871
        %vm881 = vcmp.gt.f32.partialorder %v861, %v871
        %vm882 = vcmp.gt.f32.partialorder %v862, %v871
        %vm883 = vcmp.gt.f32.partialorder %v863, %v871
        %vm884 = vcmp.gt.f32.partialorder %v864, %v871
        %vm885 = vcmp.gt.f32.partialorder %v865, %v871
        %vm886 = vcmp.gt.f32.partialorder %v866, %v871
        %vm887 = vcmp.gt.f32.partialorder %v867, %v871
        %vm888 = vcmp.gt.f32.partialorder %v868, %v871
        %vm889 = vcmp.gt.f32.partialorder %v869, %v871
        %vm890 = vcmp.le.f32.partialorder %v854, %v873
        %vm891 = vcmp.le.f32.partialorder %v855, %v873
        %vm892 = vcmp.le.f32.partialorder %v856, %v873
        %vm893 = vcmp.le.f32.partialorder %v857, %v873
        %vm894 = vcmp.le.f32.partialorder %v858, %v873
        %vm895 = vcmp.le.f32.partialorder %v859, %v873
        %vm896 = vcmp.le.f32.partialorder %v860, %v873
        %vm897 = vcmp.le.f32.partialorder %v861, %v873
        %vm898 = vcmp.le.f32.partialorder %v862, %v873
        %vm899 = vcmp.le.f32.partialorder %v863, %v873
        %vm900 = vcmp.le.f32.partialorder %v864, %v873
        %vm901 = vcmp.le.f32.partialorder %v865, %v873
        %vm902 = vcmp.le.f32.partialorder %v866, %v873
        %vm903 = vcmp.le.f32.partialorder %v867, %v873
        %vm904 = vcmp.le.f32.partialorder %v868, %v873
        %vm905 = vcmp.le.f32.partialorder %v869, %v873
        %vm906 = vmand %vm874, %vm890
        %vm907 = vmand %vm875, %vm891
        %vm908 = vmand %vm876, %vm892
        %vm909 = vmand %vm877, %vm893
        %vm910 = vmand %vm878, %vm894
        %vm911 = vmand %vm879, %vm895
        %vm912 = vmand %vm880, %vm896
        %vm913 = vmand %vm881, %vm897
        %vm914 = vmand %vm882, %vm898
        %vm915 = vmand %vm883, %vm899
        %vm916 = vmand %vm884, %vm900
        %vm917 = vmand %vm885, %vm901
        %vm918 = vmand %vm886, %vm902
        %vm919 = vmand %vm887, %vm903
        %vm920 = vmand %vm888, %vm904
        %vm921 = vmand %vm889, %vm905
        %v922 = vsel %vm906, 1, 0
        %v923 = vsel %vm907, 1, 0
        %v924 = vsel %vm908, 1, 0
        %v925 = vsel %vm909, 1, 0
        %v926 = vsel %vm910, 1, 0
        %v927 = vsel %vm911, 1, 0
        %v928 = vsel %vm912, 1, 0
        %v929 = vsel %vm913, 1, 0
        %v930 = vsel %vm914, 1, 0
        %v931 = vsel %vm915, 1, 0
        %v932 = vsel %vm916, 1, 0
        %v933 = vsel %vm917, 1, 0
        %v934 = vsel %vm918, 1, 0
        %v935 = vsel %vm919, 1, 0
        %v936 = vsel %vm920, 1, 0
        %v937 = vsel %vm921, 1, 0
        %v938 = vcvt.s32.f32 %v922
        %v939 = vcvt.s32.f32 %v923
        %v940 = vcvt.s32.f32 %v924
        %v941 = vcvt.s32.f32 %v925
        %v942 = vcvt.s32.f32 %v926
        %v943 = vcvt.s32.f32 %v927
        %v944 = vcvt.s32.f32 %v928
        %v945 = vcvt.s32.f32 %v929
        %v946 = vcvt.s32.f32 %v930
        %v947 = vcvt.s32.f32 %v931
        %v948 = vcvt.s32.f32 %v932
        %v949 = vcvt.s32.f32 %v933
        %v950 = vcvt.s32.f32 %v934
        %v951 = vcvt.s32.f32 %v935
        %v952 = vcvt.s32.f32 %v936
        %v953 = vcvt.s32.f32 %v937
        %v954 = vld [vmem:[#allocation2] sm:$0x1]
        %vm955 = vcmask 121856
        %v956 = vsel %vm955, %v938, 0.0
        %v957 = vsel %vm955, %v939, 0.0
        %v958 = vadd.f32 %v956, %v957
        %v959 = vsel %vm955, %v940, 0.0
        %v960 = vadd.f32 %v958, %v959
        %v961 = vsel %vm955, %v941, 0.0
        %v962 = vadd.f32 %v960, %v961
        %v963 = vsel %vm955, %v942, 0.0
        %v964 = vadd.f32 %v962, %v963
        %v965 = vsel %vm955, %v943, 0.0
        %v966 = vadd.f32 %v964, %v965
        %v967 = vsel %vm955, %v944, 0.0
        %v968 = vadd.f32 %v966, %v967
        %v969 = vsel %vm955, %v945, 0.0
        %v970 = vadd.f32 %v968, %v969
        %v971 = vsel %vm955, %v946, 0.0
        %v972 = vadd.f32 %v970, %v971
        %v973 = vsel %vm955, %v947, 0.0
        %v974 = vadd.f32 %v972, %v973
        %v975 = vsel %vm955, %v948, 0.0
        %v976 = vadd.f32 %v974, %v975
        %v977 = vsel %vm955, %v949, 0.0
        %v978 = vadd.f32 %v976, %v977
        %v979 = vsel %vm955, %v950, 0.0
        %v980 = vadd.f32 %v978, %v979
        %v981 = vsel %vm955, %v951, 0.0
        %v982 = vadd.f32 %v980, %v981
        %v983 = vsel %vm955, %v952, 0.0
        %v984 = vadd.f32 %v982, %v983
        %v985 = vsel %vm955, %v953, 0.0
        %v986 = vadd.f32 %v984, %v985
        %v987 = vrot.slane %v986, 4
        %v988 = vadd.f32 %v986, %v987
        %v989 = vrot.slane %v988, 2
        %v990 = vadd.f32 %v988, %v989
        %v991 = vrot.slane %v990, 1
        %v992 = vadd.f32 %v990, %v991
        %v993 = vadd.f32 %v954, %v992
        %vm994 = vcmask 114688
        %995 = vst.msk [vmem:[#allocation2] sm:$0x1] %vm994, %v993
        %v996 = vld [vmem:[#allocation3] sm:$0x1]
        %v997 = vmul.f32 %v938, %v854
        %v998 = vmul.f32 %v939, %v855
        %v999 = vmul.f32 %v940, %v856
        %v1000 = vmul.f32 %v941, %v857
        %v1001 = vmul.f32 %v942, %v858
        %v1002 = vmul.f32 %v943, %v859
        %v1003 = vmul.f32 %v944, %v860
        %v1004 = vmul.f32 %v945, %v861
        %v1005 = vmul.f32 %v946, %v862
        %v1006 = vmul.f32 %v947, %v863
        %v1007 = vmul.f32 %v948, %v864
        %v1008 = vmul.f32 %v949, %v865
        %v1009 = vmul.f32 %v950, %v866
        %v1010 = vmul.f32 %v951, %v867
        %v1011 = vmul.f32 %v952, %v868
        %v1012 = vmul.f32 %v953, %v869
        %v1013 = vsel %vm955, %v997, 0.0
        %v1014 = vsel %vm955, %v998, 0.0
        %v1015 = vadd.f32 %v1013, %v1014
        %v1016 = vsel %vm955, %v999, 0.0
        %v1017 = vadd.f32 %v1015, %v1016
        %v1018 = vsel %vm955, %v1000, 0.0
        %v1019 = vadd.f32 %v1017, %v1018
        %v1020 = vsel %vm955, %v1001, 0.0
        %v1021 = vadd.f32 %v1019, %v1020
        %v1022 = vsel %vm955, %v1002, 0.0
        %v1023 = vadd.f32 %v1021, %v1022
        %v1024 = vsel %vm955, %v1003, 0.0
        %v1025 = vadd.f32 %v1023, %v1024
        %v1026 = vsel %vm955, %v1004, 0.0
        %v1027 = vadd.f32 %v1025, %v1026
        %v1028 = vsel %vm955, %v1005, 0.0
        %v1029 = vadd.f32 %v1027, %v1028
        %v1030 = vsel %vm955, %v1006, 0.0
        %v1031 = vadd.f32 %v1029, %v1030
        %v1032 = vsel %vm955, %v1007, 0.0
        %v1033 = vadd.f32 %v1031, %v1032
        %v1034 = vsel %vm955, %v1008, 0.0
        %v1035 = vadd.f32 %v1033, %v1034
        %v1036 = vsel %vm955, %v1009, 0.0
        %v1037 = vadd.f32 %v1035, %v1036
        %v1038 = vsel %vm955, %v1010, 0.0
        %v1039 = vadd.f32 %v1037, %v1038
        %v1040 = vsel %vm955, %v1011, 0.0
        %v1041 = vadd.f32 %v1039, %v1040
        %v1042 = vsel %vm955, %v1012, 0.0
        %v1043 = vadd.f32 %v1041, %v1042
        %v1044 = vrot.slane %v1043, 4
        %v1045 = vadd.f32 %v1043, %v1044
        %v1046 = vrot.slane %v1045, 2
        %v1047 = vadd.f32 %v1045, %v1046
        %v1048 = vrot.slane %v1047, 1
        %v1049 = vadd.f32 %v1047, %v1048
        %v1050 = vadd.f32 %v996, %v1049
        %1051 = vst.msk [vmem:[#allocation3] sm:$0x1] %vm994, %v1050
        %v1052 = vld [vmem:[#allocation4] sm:$0x1]
        %1054 = vset.pattern.permute.xlu0 0
        %1055 = vperm.xlu0 %1054, %v788
        %v1056 = vpop.permute.xlu0 %1055
        %1059 = vset.pattern.permute.xlu0 0
        %1060 = vperm.xlu0 %1059, %v789
        %v1061 = vpop.permute.xlu0 %1060
        %1064 = vset.pattern.permute.xlu0 0
        %1065 = vperm.xlu0 %1064, %v790
        %v1066 = vpop.permute.xlu0 %1065
        %1069 = vset.pattern.permute.xlu0 0
        %1070 = vperm.xlu0 %1069, %v791
        %v1071 = vpop.permute.xlu0 %1070
        %1074 = vset.pattern.permute.xlu0 0
        %1075 = vperm.xlu0 %1074, %v792
        %v1076 = vpop.permute.xlu0 %1075
        %1079 = vset.pattern.permute.xlu0 0
        %1080 = vperm.xlu0 %1079, %v793
        %v1081 = vpop.permute.xlu0 %1080
        %1084 = vset.pattern.permute.xlu0 0
        %1085 = vperm.xlu0 %1084, %v794
        %v1086 = vpop.permute.xlu0 %1085
        %1089 = vset.pattern.permute.xlu0 0
        %1090 = vperm.xlu0 %1089, %v795
        %v1091 = vpop.permute.xlu0 %1090
        %1094 = vset.pattern.permute.xlu0 0
        %1095 = vperm.xlu0 %1094, %v796
        %v1096 = vpop.permute.xlu0 %1095
        %1099 = vset.pattern.permute.xlu0 0
        %1100 = vperm.xlu0 %1099, %v797
        %v1101 = vpop.permute.xlu0 %1100
        %1104 = vset.pattern.permute.xlu0 0
        %1105 = vperm.xlu0 %1104, %v798
        %v1106 = vpop.permute.xlu0 %1105
        %1109 = vset.pattern.permute.xlu0 0
        %1110 = vperm.xlu0 %1109, %v799
        %v1111 = vpop.permute.xlu0 %1110
        %1114 = vset.pattern.permute.xlu0 0
        %1115 = vperm.xlu0 %1114, %v800
        %v1116 = vpop.permute.xlu0 %1115
        %1119 = vset.pattern.permute.xlu0 0
        %1120 = vperm.xlu0 %1119, %v801
        %v1121 = vpop.permute.xlu0 %1120
        %1124 = vset.pattern.permute.xlu0 0
        %1125 = vperm.xlu0 %1124, %v802
        %v1126 = vpop.permute.xlu0 %1125
        %1129 = vset.pattern.permute.xlu0 0
        %1130 = vperm.xlu0 %1129, %v803
        %v1131 = vpop.permute.xlu0 %1130
        %v1133 = vmul.f32 %v938, %v1056
        %v1134 = vmul.f32 %v939, %v1061
        %v1135 = vmul.f32 %v940, %v1066
        %v1136 = vmul.f32 %v941, %v1071
        %v1137 = vmul.f32 %v942, %v1076
        %v1138 = vmul.f32 %v943, %v1081
        %v1139 = vmul.f32 %v944, %v1086
        %v1140 = vmul.f32 %v945, %v1091
        %v1141 = vmul.f32 %v946, %v1096
        %v1142 = vmul.f32 %v947, %v1101
        %v1143 = vmul.f32 %v948, %v1106
        %v1144 = vmul.f32 %v949, %v1111
        %v1145 = vmul.f32 %v950, %v1116
        %v1146 = vmul.f32 %v951, %v1121
        %v1147 = vmul.f32 %v952, %v1126
        %v1148 = vmul.f32 %v953, %v1131
        %v1149 = vsel %vm955, %v1133, 0.0
        %v1150 = vsel %vm955, %v1134, 0.0
        %v1151 = vadd.f32 %v1149, %v1150
        %v1152 = vsel %vm955, %v1135, 0.0
        %v1153 = vadd.f32 %v1151, %v1152
        %v1154 = vsel %vm955, %v1136, 0.0
        %v1155 = vadd.f32 %v1153, %v1154
        %v1156 = vsel %vm955, %v1137, 0.0
        %v1157 = vadd.f32 %v1155, %v1156
        %v1158 = vsel %vm955, %v1138, 0.0
        %v1159 = vadd.f32 %v1157, %v1158
        %v1160 = vsel %vm955, %v1139, 0.0
        %v1161 = vadd.f32 %v1159, %v1160
        %v1162 = vsel %vm955, %v1140, 0.0
        %v1163 = vadd.f32 %v1161, %v1162
        %v1164 = vsel %vm955, %v1141, 0.0
        %v1165 = vadd.f32 %v1163, %v1164
        %v1166 = vsel %vm955, %v1142, 0.0
        %v1167 = vadd.f32 %v1165, %v1166
        %v1168 = vsel %vm955, %v1143, 0.0
        %v1169 = vadd.f32 %v1167, %v1168
        %v1170 = vsel %vm955, %v1144, 0.0
        %v1171 = vadd.f32 %v1169, %v1170
        %v1172 = vsel %vm955, %v1145, 0.0
        %v1173 = vadd.f32 %v1171, %v1172
        %v1174 = vsel %vm955, %v1146, 0.0
        %v1175 = vadd.f32 %v1173, %v1174
        %v1176 = vsel %vm955, %v1147, 0.0
        %v1177 = vadd.f32 %v1175, %v1176
        %v1178 = vsel %vm955, %v1148, 0.0
        %v1179 = vadd.f32 %v1177, %v1178
        %v1180 = vrot.slane %v1179, 4
        %v1181 = vadd.f32 %v1179, %v1180
        %v1182 = vrot.slane %v1181, 2
        %v1183 = vadd.f32 %v1181, %v1182
        %v1184 = vrot.slane %v1183, 1
        %v1185 = vadd.f32 %v1183, %v1184
        %v1186 = vadd.f32 %v1052, %v1185
        %1187 = vst.msk [vmem:[#allocation4] sm:$0x1] %vm994, %v1186
      $region36: #{tpu_custom_call.1} parent=27 // pred_fallthru
        _
      %p1188 = scmp.eq.s32.totalorder %s18, 1
      // Predicated region
      $region37: #{tpu_custom_call.1} parent=27 // pred_check
        %p1189 = pneg %p1188
      $region38: #{tpu_custom_call.1} parent=27 // pred_check_branch
        %1191 = sbr.rel (%p1189) target = $region40
      $region39: #{tpu_custom_call.1} parent=27 // pred_region
        %v1192 = vld [vmem:[#allocation2] sm:$0x1]
        %v1193 = vld [vmem:[#allocation3] sm:$0x1]
        %v1194 = vld [vmem:[#allocation4] sm:$0x1]
        %v1196 = vlaneseq
        %v1197 = vshrl.u32 %v1196, 7
        %v1198 = vsub.s32 0, %v1197
        %v1199 = vrot.slane %v1193, %v1198
        %v1202 = vlaneseq
        %v1203 = vshrl.u32 %v1202, 7
        %v1204 = vsub.s32 0, %v1203
        %v1205 = vrot.slane %v1194, %v1204
        %vm1207 = vcmask 1040384
        %v1208 = vsel %vm1207, %v1192, %v1199
        %vm1209 = vcmask 1041408
        %v1210 = vsel %vm1209, %v1208, %v1205
        %vm1211 = vcmask 116736
        %1212 = vst.msk [vmem:[%s273] sm:$0x7] %vm1211, %v1210
      $region40: #{tpu_custom_call.1} parent=27 // pred_fallthru
        _
      %p1213 = scmp.lt.s32.totalorder %s17, 1
      %s1214 = scalar_select %p1213, %s17, 1
      %s1215 = smul.addr %s1214, 4
      %s1216 = scalar_lea.vmem %s2, %s1215
      // Predicated region
      $region41: #{tpu_custom_call.1} parent=27 // pred_check
        %p1217 = pneg %p111
      $region42: #{tpu_custom_call.1} parent=27 // pred_check_branch
        %1219 = sbr.rel (%p1217) target = $region44
      $region43: #{tpu_custom_call.1} parent=27 // pred_region
        _
      $region44: #{tpu_custom_call.1} parent=27 // pred_fallthru
        _
    $region28: #{tpu_custom_call.1} parent=5 // pred_fallthru
      _
    %p1220 = scmp.le.s32.totalorder 2, %s8
    // Predicated region
    $region45: #{tpu_custom_call.1} parent=5 // pred_check
      %p1221 = pneg %p1220
    $region46: #{tpu_custom_call.1} parent=5 // pred_check_branch
      %1223 = sbr.rel (%p1221) target = $region48
    $region47: #{tpu_custom_call.1} parent=5 // pred_region
      %s1224 = ssub.s32 %s8, 2
      // Predicated region
      $region49: #{tpu_custom_call.1} parent=47 // pred_check
        %p1225 = pneg %p117
      $region50: #{tpu_custom_call.1} parent=47 // pred_check_branch
        %1227 = sbr.rel (%p1225) target = $region52
      $region51: #{tpu_custom_call.1} parent=47 // pred_region
        %p1228 = scmp.lt.s32.totalorder %s19, 1
        %s1229 = scalar_select %p1228, %s19, 1
        %s1230 = smul.addr %s1229, 4
        %s1231 = scalar_lea.vmem %s2, %s1230
      $region52: #{tpu_custom_call.1} parent=47 // pred_fallthru
        _
    $region48: #{tpu_custom_call.1} parent=5 // pred_fallthru
      _
  $region6: #{tpu_custom_call.1} parent=0 // loop_footer
    %s12 = sadd.s32 1, %s8
  $region7: #{tpu_custom_call.1} parent=0 // loop_footer_branch
    %7 = sbr.rel target = $region3
  $region8: #{tpu_custom_call.1} parent=0 // loop_exit
    _

</llo_original>
